<compile_context>
chip_gen: v7x
topology: tpu7x:2x2x1
jax: 0.10.0
libtpu: 0.0.40
codegen_flags: <defaults>
</compile_context>

<pallas_src>
import functools

import jax
import jax.numpy as jnp
from jax.experimental import pallas as pl
from jax.experimental.pallas import tpu as pltpu

_VMEM_LIMIT = 40 * 1024 * 1024        # fits v7x's 64 MiB VMEM with headroom


# ----------------------------------------------------------------------------
# helpers
# ----------------------------------------------------------------------------
def _round_up(x, m):
    return ((x + m - 1) // m) * m


def _itemsize(dtype):
    return 2 if dtype == jnp.bfloat16 else 4


# ----------------------------------------------------------------------------
# Pallas kernel 1: fused  out = act(X @ W + b)   (1x1 convolutions)
# ----------------------------------------------------------------------------
def _matmul_kernel(x_ref, w_ref, b_ref, o_ref, acc_ref, *, act):
    @pl.when(pl.program_id(2) == 0)
    def _():
        acc_ref[...] = jnp.zeros_like(acc_ref)

    acc_ref[...] += jnp.dot(x_ref[...], w_ref[...],
                            preferred_element_type=jnp.float32)

    @pl.when(pl.program_id(2) == pl.num_programs(2) - 1)
    def _():
        y = acc_ref[...] + b_ref[...]
        if act == "relu":
            y = jnp.maximum(y, 0.0)
        elif act == "leaky":                 # nn.LeakyReLU default slope 0.01
            y = jnp.where(y >= 0, y, 0.01 * y)
        o_ref[...] = y.astype(o_ref.dtype)


def fused_matmul(x, w_packed, bias_packed, n_out, act="none",
                 out_dtype=jnp.bfloat16, keep_padded=False):
    """act(x @ W + b).  W is pre-padded bf16 (Kp, Np) with BN scale folded in,
    bias is fp32 (1, Np).  bf16 MXU operands, fp32 accumulation."""
    M, K = x.shape
    Kp, Np = w_packed.shape
    x = x.astype(jnp.bfloat16)
    if Kp != K:
        x = jnp.pad(x, ((0, 0), (0, Kp - K)))

    # M padded up to the chosen tile (never silently degrade to tiny tm);
    # tn stays 256 whenever possible (full MXU width on v6e/v7x);
    # K tiles up to 2048 (or the whole K when it already fits).
    tm = next(c for c in (256, 128, 64, 32, 16, 8)
              if c <= max(_round_up(M, 8), 8))
    Mp = _round_up(M, tm)
    if Mp != M:
        x = jnp.pad(x, ((0, Mp - M), (0, 0)))
    tn = 256 if Np % 256 == 0 else 128
    if Kp <= 2048:
        tk = Kp
    else:
        tk = next(c for c in (2048, 1024, 512, 256, 128) if Kp % c == 0)

    grid = (Mp // tm, Np // tn, Kp // tk)
    cost = pl.CostEstimate(
        flops=2 * Mp * Kp * Np,
        transcendentals=0,
        bytes_accessed=(Mp * Kp * 2 * (Np // tn)
                        + Kp * Np * 2 * (Mp // tm)
                        + Mp * Np * _itemsize(out_dtype)),
    )
    out = pl.pallas_call(
        functools.partial(_matmul_kernel, act=act),
        out_shape=jax.ShapeDtypeStruct((Mp, Np), out_dtype),
        grid_spec=pltpu.PrefetchScalarGridSpec(
            num_scalar_prefetch=0,
            grid=grid,
            in_specs=[
                pl.BlockSpec((tm, tk), lambda i, j, k: (i, k)),
                pl.BlockSpec((tk, tn), lambda i, j, k: (k, j)),
                pl.BlockSpec((1, tn), lambda i, j, k: (0, j)),
            ],
            out_specs=pl.BlockSpec((tm, tn), lambda i, j, k: (i, j)),
            scratch_shapes=[pltpu.VMEM((tm, tn), jnp.float32)],
        ),
        compiler_params=pltpu.CompilerParams(
            dimension_semantics=("parallel", "parallel", "arbitrary"),
            vmem_limit_bytes=_VMEM_LIMIT,
        ),
        cost_estimate=cost,
    )(x, w_packed, bias_packed)
    out = out[:M]
    return out if keep_padded else out[:, :n_out]


# ----------------------------------------------------------------------------
# Pallas kernel 2: direct 3x3 dilated convolution + folded BN + activation
#
# The input is padded (top=pad, bottom=pad+1, left/right=pad, channels->Kp)
# and flattened (H,W)->HW so that for tap (kh,kw) the whole image's inputs
# are one contiguous slice:  flat[(r*wp+c) + (base+kh*d)*wp + (base+kw*d)].
# The kernel therefore computes an output of width wp (= w + 2*pad); the
# 2*pad garbage columns are sliced away afterwards.
#   grid = (image, Cout block, Cin block) ; kh/kw unrolled inside the kernel.
# ----------------------------------------------------------------------------
def _conv3x3_kernel(x_ref, w_ref, b_ref, o_ref, acc_ref, *,
                    m, wp, base, dil, act, tm):
    k = pl.program_id(2)
    chunks = [(s, min(tm, m - s)) for s in range(0, m, tm)]

    @pl.when(k == 0)
    def _():
        acc_ref[...] = jnp.zeros_like(acc_ref)

    for s, sz in chunks:
        acc = acc_ref[s:s + sz, :]
        for kh in range(3):
            for kw in range(3):
                off = (base + kh * dil) * wp + (base + kw * dil)
                acc = acc + jnp.dot(x_ref[off + s:off + s + sz, :],
                                    w_ref[kh, kw],
                                    preferred_element_type=jnp.float32)
        acc_ref[s:s + sz, :] = acc

    @pl.when(k == pl.num_programs(2) - 1)
    def _():
        for s, sz in chunks:
            y = acc_ref[s:s + sz, :] + b_ref[...]
            if act == "relu":
                y = jnp.maximum(y, 0.0)
            elif act == "leaky":
                y = jnp.where(y >= 0, y, 0.01 * y)
            o_ref[s:s + sz, :] = y.astype(o_ref.dtype)


def pad_for_conv3x3(x_nhwc, pad, kp):
    """Zero-pad for a 3x3 'same' conv with padding/dilation <= `pad`, pad the
    channel dim to kp, flatten (H,W).  One padded copy can be shared by several
    dilations (base offset = pad - dilation is handled in the kernel)."""
    n, h, w, c = x_nhwc.shape
    x = x_nhwc.astype(jnp.bfloat16)
    x = jnp.pad(x, ((0, 0), (pad, pad + 1), (pad, pad), (0, kp - c)))
    return x.reshape(n, (h + 2 * pad + 1) * (w + 2 * pad), kp)


def conv3x3_bn_act(x_flat, h, w, pad, w_packed, bias_packed, n_out, dilation,
                   act="relu", out_dtype=jnp.bfloat16):
    """3x3 'same' conv (stride 1, given dilation) + folded-BN bias + act.
    x_flat: output of pad_for_conv3x3.  w_packed: (3,3,Kp,Np) bf16, BN folded."""
    n, flat, kp_in = x_flat.shape
    _, _, Kp, Np = w_packed.shape
    assert kp_in == Kp and pad >= dilation
    wp = w + 2 * pad
    base = pad - dilation
    m = h * wp                                   # MXU M-dim = all output rows

    tn = 256 if Np % 256 == 0 else 128
    tk = 128
    for cand in (1024, 512, 384, 256, 128):
        if Kp % cand == 0 and \
           (flat * cand + 9 * cand * tn) * 2 * 2 + m * tn * 4 <= 24 * 1024 * 1024:
            tk = cand
            break
    # TODO(synk): for very large stride-4 maps (H*W beyond ~64x64) add an
    #   H-slab split in this wrapper so the (m, tn) accumulator stays in VMEM.

    grid = (n, Np // tn, Kp // tk)
    cost = pl.CostEstimate(
        flops=2 * n * 9 * m * Kp * Np,
        transcendentals=0,
        bytes_accessed=(n * flat * Kp * 2 * (Np // tn)     # input per Cout pass
                        + n * 9 * Kp * Np * 2              # weights per image
                        + n * m * Np * _itemsize(out_dtype)),
    )
    out = pl.pallas_call(
        functools.partial(_conv3x3_kernel, m=m, wp=wp, base=base,
                          dil=dilation, act=act, tm=512),
        out_shape=jax.ShapeDtypeStruct((n, m, Np), out_dtype),
        grid_spec=pltpu.PrefetchScalarGridSpec(
            num_scalar_prefetch=0,
            grid=grid,
            in_specs=[
                pl.BlockSpec((None, flat, tk), lambda b, j, k: (b, 0, k)),
                pl.BlockSpec((3, 3, tk, tn), lambda b, j, k: (0, 0, k, j)),
                pl.BlockSpec((1, tn), lambda b, j, k: (0, j)),
            ],
            out_specs=pl.BlockSpec((None, m, tn), lambda b, j, k: (b, 0, j)),
            scratch_shapes=[pltpu.VMEM((m, tn), jnp.float32)],
        ),
        compiler_params=pltpu.CompilerParams(
            dimension_semantics=("parallel", "parallel", "arbitrary"),
            vmem_limit_bytes=_VMEM_LIMIT,
        ),
        cost_estimate=cost,
    )(x_flat, w_packed, bias_packed)
    out = out.reshape(n, h, wp, Np)
    return out[:, :, :w, :n_out]                 # drop garbage pad columns


# ----------------------------------------------------------------------------
# Plain-JAX glue (layout plumbing, gathers)
# ----------------------------------------------------------------------------
def _space_to_depth(x, r):
    n, h, w, c = x.shape
    x = x.reshape(n, h // r, r, w // r, r, c)
    x = jnp.transpose(x, (0, 1, 3, 2, 4, 5))
    return x.reshape(n, h // r, w // r, r * r * c)


def _bilinear_resize_ac(x, out_h, out_w):
    """Bilinear resize with align_corners=True.  x: NHWC."""
    x = x.astype(jnp.float32)
    n, h, w, c = x.shape
    if h == out_h and w == out_w:
        return x
    ys = jnp.linspace(0.0, float(h - 1), out_h)
    xs = jnp.linspace(0.0, float(w - 1), out_w)
    y0 = jnp.floor(ys).astype(jnp.int32)
    y1 = jnp.minimum(y0 + 1, h - 1)
    wy = ys - y0.astype(jnp.float32)
    x0 = jnp.floor(xs).astype(jnp.int32)
    x1 = jnp.minimum(x0 + 1, w - 1)
    wx = xs - x0.astype(jnp.float32)

    def interp_w(rows):
        a = rows[:, :, x0, :]
        b = rows[:, :, x1, :]
        return a * (1.0 - wx)[None, None, :, None] + b * wx[None, None, :, None]

    top = interp_w(x[:, y0, :, :])
    bot = interp_w(x[:, y1, :, :])
    return top * (1.0 - wy)[None, :, None, None] + bot * wy[None, :, None, None]


# ----------------------------------------------------------------------------
# Parameters (deterministic, synthetic) — pre-padded, BN-folded, bf16-cast once
# ----------------------------------------------------------------------------
def init_params(key, classify_classes):
    keys = iter(jax.random.split(key, 64))

    def dense(k_in, c_out):
        return jax.random.normal(next(keys), (k_in, c_out), jnp.float32) * jnp.sqrt(
            2.0 / k_in)

    def conv3(c_in, c_out):
        return jax.random.normal(next(keys), (3, 3, c_in, c_out),
                                 jnp.float32) * jnp.sqrt(2.0 / (9 * c_in))

    def bn_fold(c):
        gamma = 1.0 + 0.1 * jax.random.normal(next(keys), (c,), jnp.float32)
        beta = 0.1 * jax.random.normal(next(keys), (c,), jnp.float32)
        running_mean = jnp.zeros((c,), jnp.float32)
        running_var = jnp.ones((c,), jnp.float32)
        scale = gamma / jnp.sqrt(running_var + 1e-5)
        bias = beta - running_mean * scale
        return scale, bias

    def pack_w(w, scale=None):
        k_in, n = w.shape
        if scale is not None:
            w = w * scale[None, :]
        kp, np_ = _round_up(k_in, 128), _round_up(n, 128)
        return jnp.pad(w, ((0, kp - k_in), (0, np_ - n))).astype(jnp.bfloat16)

    def pack_conv(w, scale=None):                 # w: (3,3,Cin,Cout)
        _, _, k_in, n = w.shape
        if scale is not None:
            w = w * scale[None, None, None, :]
        kp, np_ = _round_up(k_in, 128), _round_up(n, 128)
        return jnp.pad(w, ((0, 0), (0, 0), (0, kp - k_in),
                           (0, np_ - n))).astype(jnp.bfloat16)

    def pack_b(b, n_pad):
        return jnp.pad(b.astype(jnp.float32), (0, n_pad - b.shape[0])).reshape(1, n_pad)

    p = {}
    # stand-in backbone (see TODO at top of file)
    p["stem_w"] = pack_w(dense(48, 256))
    p["stem_b"] = jnp.zeros((1, 256), jnp.float32)
    p["deep_w"] = pack_w(dense(4096, 2048))
    p["deep_b"] = jnp.zeros((1, 2048), jnp.float32)

    # ASPP(2048, 256, [6, 12, 18]); map_bn (1024ch) folded per branch
    map_bn_s, map_bn_b = bn_fold(1024)
    p["aspp_b0_w"] = pack_w(dense(2048, 256), map_bn_s[0:256])
    p["aspp_b0_b"] = pack_b(map_bn_b[0:256], 256)
    for bi in range(3):
        sl = slice(256 * (bi + 1), 256 * (bi + 2))
        p["aspp_b%d_w" % (bi + 1)] = pack_conv(conv3(2048, 256), map_bn_s[sl])
        p["aspp_b%d_b" % (bi + 1)] = pack_b(map_bn_b[sl], 256)
    p["aspp_red_w"] = pack_w(dense(1024, 256))
    p["aspp_red_b"] = jnp.zeros((1, 256), jnp.float32)
    # global-pooling branch (M == batch -> plain XLA dot, raw fp32 weights)
    p["aspp_gp_w"] = dense(2048, 256)
    p["aspp_gp_bn_scale"], p["aspp_gp_bn_bias"] = bn_fold(256)
    p["aspp_pool_red_w"] = dense(256, 256)
    p["aspp_red_bn_scale"], p["aspp_red_bn_bias"] = bn_fold(256)

    # Head.reduce (output kept padded to 128 so the concat is already Kp-aligned)
    r_s, r_b = bn_fold(48)
    p["reduce_w"] = pack_w(dense(256, 48), r_s)
    p["reduce_b"] = pack_b(r_b, 128)
    # Head.last_conv
    l1_s, l1_b = bn_fold(256)
    p["last1_w"] = pack_conv(conv3(304, 256), l1_s)     # Cin padded 304 -> 384
    p["last1_b"] = pack_b(l1_b, 256)
    l2_s, l2_b = bn_fold(256)
    p["last2_w"] = pack_conv(conv3(256, 256), l2_s)
    p["last2_b"] = pack_b(l2_b, 256)

    # classifier heads fused into one 1x1 conv: [SIC | SOD | FLOE]
    ws, bs = [], []
    for name in ("SIC", "SOD", "FLOE"):
        nc = classify_classes[name]
        ws.append(dense(256, nc))
        bs.append(0.01 * jax.random.normal(next(keys), (nc,), jnp.float32))
    wcat = jnp.concatenate(ws, axis=1)
    bcat = jnp.concatenate(bs)
    p["cls_w"] = pack_w(wcat)
    p["cls_b"] = pack_b(bcat, _round_up(wcat.shape[1], 128))
    return p


# ----------------------------------------------------------------------------
# Forward pass
# ----------------------------------------------------------------------------
def deeplabv3plus_forward(params, x_nchw, classify_classes):
    p = params
    n, _, h, w = x_nchw.shape
    x = jnp.transpose(x_nchw, (0, 2, 3, 1)).astype(jnp.bfloat16)   # NHWC

    # ---- stand-in backbone (see TODO at top of file) ----
    lh, lw = h // 4, w // 4
    hh, hw = h // 16, w // 16
    f0 = _space_to_depth(x, 4).reshape(n * lh * lw, -1)
    f_low = fused_matmul(f0, p["stem_w"], p["stem_b"], 256, act="relu")
    f_low = f_low.reshape(n, lh, lw, 256)                          # f_list[0]
    f1 = _space_to_depth(f_low, 4).reshape(n * hh * hw, -1)
    f_high = fused_matmul(f1, p["deep_w"], p["deep_b"], 2048, act="relu")
    f_high = f_high.reshape(n, hh, hw, 2048)                       # f_list[-1]

    # ---- ASPP ----
    mh = n * hh * hw
    # single pad-18 padded/flattened copy of f_high shared by all 3 dilations
    pad_a = 18
    f_high_flat = pad_for_conv3x3(f_high, pad_a, 2048)
    branch = [fused_matmul(f_high.reshape(mh, 2048), p["aspp_b0_w"],
                           p["aspp_b0_b"], 256, act="leaky")]
    for bi, d in enumerate((6, 12, 18)):
        b = conv3x3_bn_act(f_high_flat, hh, hw, pad_a,
                           p["aspp_b%d_w" % (bi + 1)],
                           p["aspp_b%d_b" % (bi + 1)], 256,
                           dilation=d, act="leaky")
        branch.append(b.reshape(mh, 256))
    cat = jnp.concatenate(branch, axis=-1)                         # (Mh, 1024) bf16
    out_red = fused_matmul(cat, p["aspp_red_w"], p["aspp_red_b"], 256,
                           act="none", out_dtype=jnp.float32)

    # global-pooling branch (training / pooling_size=None path): M == batch,
    # far too small for the MXU -> plain XLA dot
    pool = f_high.astype(jnp.float32).reshape(n, hh * hw, 2048).mean(axis=1)
    pool = jnp.dot(pool, p["aspp_gp_w"])
    pool = pool * p["aspp_gp_bn_scale"] + p["aspp_gp_bn_bias"]
    pool = jnp.where(pool >= 0, pool, 0.01 * pool)
    pool = jnp.dot(pool, p["aspp_pool_red_w"])                     # (N, 256)

    y = out_red.reshape(n, hh * hw, 256) + pool[:, None, :]        # out += pool
    y = y * p["aspp_red_bn_scale"] + p["aspp_red_bn_bias"]         # red_bn
    f_aspp = jnp.where(y >= 0, y, 0.01 * y).reshape(n, hh, hw, 256)

    # ---- Head ----
    # reduce output kept channel-padded to 128 (padded cols are exact zeros),
    # so the concat is already 384 = Kp channels -> no extra pad copy.
    low_red = fused_matmul(f_low.reshape(n * lh * lw, 256), p["reduce_w"],
                           p["reduce_b"], 48, act="relu",
                           keep_padded=True).reshape(n, lh, lw, 128)
    f_up = _bilinear_resize_ac(f_aspp, lh, lw).astype(jnp.bfloat16)
    f_cat = jnp.concatenate([f_up, low_red], axis=-1)              # (N,lh,lw,384)

    h1 = conv3x3_bn_act(pad_for_conv3x3(f_cat, 1, 384), lh, lw, 1,
                        p["last1_w"], p["last1_b"], 256,
                        dilation=1, act="relu")
    h2 = conv3x3_bn_act(pad_for_conv3x3(h1, 1, 256), lh, lw, 1,
                        p["last2_w"], p["last2_b"], 256,
                        dilation=1, act="relu")                    # (N,lh,lw,256)

    # fused classifier heads: one matmul + one upsample for SIC|SOD|FLOE
    ncs = [classify_classes[k] for k in ("SIC", "SOD", "FLOE")]
    n_tot = sum(ncs)
    logits = fused_matmul(h2.reshape(n * lh * lw, 256), p["cls_w"], p["cls_b"],
                          n_tot, act="none", out_dtype=jnp.float32)
    logits = logits.reshape(n, lh, lw, n_tot)
    logits = _bilinear_resize_ac(logits, h, w)                     # align_corners=True
    outs, off = [], 0
    for nc in ncs:
        outs.append(jnp.transpose(logits[..., off:off + nc], (0, 3, 1, 2)))
        off += nc
    return tuple(outs)


# ----------------------------------------------------------------------------
if __name__ == "__main__":
    classify_classes = {"SIC": 11, "SOD": 6, "FLOE": 7}
    key = jax.random.PRNGKey(0)
    pkey, xkey = jax.random.split(key)
    params = init_params(pkey, classify_classes)

    x = jax.random.normal(xkey, (2, 3, 64, 64), jnp.float32)       # NCHW input
    sic_out, sod_out, floe_out = deeplabv3plus_forward(params, x, classify_classes)
    jax.block_until_ready((sic_out, sod_out, floe_out))

    assert sic_out.shape == (2, 11, 64, 64)
    assert sod_out.shape == (2, 6, 64, 64)
    assert floe_out.shape == (2, 7, 64, 64)
    assert all(bool(jnp.all(jnp.isfinite(o))) for o in (sic_out, sod_out, floe_out))
    print("KERNEL_OK")
</pallas_src>

<mosaic_0001>
module attributes {stable_mosaic.version = 11 : i64} {
  func.func @_matmul_kernel(%arg0: i32, %arg1: i32, %arg2: i32, %arg3: memref<256x128xbf16, #tpu.memory_space<vmem>>, %arg4: memref<128x256xbf16, #tpu.memory_space<vmem>>, %arg5: memref<1x256xf32, #tpu.memory_space<vmem>>, %arg6: memref<256x256xbf16, #tpu.memory_space<vmem>>, %arg7: memref<256x256xf32, #tpu.memory_space<vmem>>) attributes {dimension_semantics = [#tpu.dimension_semantics<parallel>, #tpu.dimension_semantics<parallel>, #tpu.dimension_semantics<arbitrary>], iteration_bounds = array<i64: 2, 1, 1>, scalar_prefetch = 0 : i64, scratch_operands = 1 : i64, tpu.core_type = #tpu.core_type<tc>, window_params = [{transform_indices = @transform_0, window_bounds = array<i64: 256, 128>}, {transform_indices = @transform_1, window_bounds = array<i64: 128, 256>}, {transform_indices = @transform_2, window_bounds = array<i64: 1, 256>}, {transform_indices = @transform_3, window_bounds = array<i64: 256, 256>}]} {
    %c0_i32 = arith.constant 0 : i32
    %0 = arith.cmpi eq, %arg2, %c0_i32 : i32
    %1 = arith.extui %0 : i1 to i32
    %c0_i32_0 = arith.constant 0 : i32
    %2 = arith.cmpi ne, %1, %c0_i32_0 : i32
    scf.if %2 {
      %cst_10 = arith.constant 0.000000e+00 : f32
      %12 = vector.broadcast %cst_10 : f32 to vector<256x256xf32>
      %c0_11 = arith.constant 0 : index
      %c0_12 = arith.constant 0 : index
      %13 = vector.load %arg7[%c0_11, %c0_12] : memref<256x256xf32, #tpu.memory_space<vmem>>, vector<256x256xf32>
      tpu.vector_store %arg7[%c0_11, %c0_12], %12 {strides = array<i32>} : memref<256x256xf32, #tpu.memory_space<vmem>>, vector<256x256xf32>,
    } else {
    }
    %c0 = arith.constant 0 : index
    %c0_1 = arith.constant 0 : index
    %3 = vector.load %arg7[%c0, %c0_1] : memref<256x256xf32, #tpu.memory_space<vmem>>, vector<256x256xf32>
    %c0_2 = arith.constant 0 : index
    %c0_3 = arith.constant 0 : index
    %4 = vector.load %arg3[%c0_2, %c0_3] : memref<256x128xbf16, #tpu.memory_space<vmem>>, vector<256x128xbf16>
    %c0_4 = arith.constant 0 : index
    %c0_5 = arith.constant 0 : index
    %5 = vector.load %arg4[%c0_4, %c0_5] : memref<128x256xbf16, #tpu.memory_space<vmem>>, vector<128x256xbf16>
    %cst = arith.constant dense<0.000000e+00> : vector<256x256xf32>
    %6 = tpu.matmul %4, %5, %cst {dimension_numbers = #tpu.dot_dimension_numbers<[1], [0], [0], [1], [0, 0, 1, 1], [], []>} : vector<256x128xbf16>, vector<128x256xbf16>, vector<256x256xf32> -> vector<256x256xf32>
    %7 = arith.addf %3, %6 : vector<256x256xf32>
    %c0_6 = arith.constant 0 : index
    %c0_7 = arith.constant 0 : index
    %8 = vector.load %arg7[%c0_6, %c0_7] : memref<256x256xf32, #tpu.memory_space<vmem>>, vector<256x256xf32>
    tpu.vector_store %arg7[%c0_6, %c0_7], %7 {strides = array<i32>} : memref<256x256xf32, #tpu.memory_space<vmem>>, vector<256x256xf32>,
    %c0_i32_8 = arith.constant 0 : i32
    %9 = arith.cmpi eq, %arg2, %c0_i32_8 : i32
    %10 = arith.extui %9 : i1 to i32
    %c0_i32_9 = arith.constant 0 : i32
    %11 = arith.cmpi ne, %10, %c0_i32_9 : i32
    scf.if %11 {
      %c0_10 = arith.constant 0 : index
      %c0_11 = arith.constant 0 : index
      %12 = vector.load %arg7[%c0_10, %c0_11] : memref<256x256xf32, #tpu.memory_space<vmem>>, vector<256x256xf32>
      %c0_12 = arith.constant 0 : index
      %c0_13 = arith.constant 0 : index
      %13 = vector.load %arg5[%c0_12, %c0_13] : memref<1x256xf32, #tpu.memory_space<vmem>>, vector<1x256xf32>
      %14 = vector.broadcast %13 : vector<1x256xf32> to vector<256x256xf32>
      %15 = arith.addf %12, %14 : vector<256x256xf32>
      %cst_14 = arith.constant 0.000000e+00 : f32
      %16 = vector.broadcast %cst_14 : f32 to vector<256x256xf32>
      %17 = arith.maximumf %15, %16 : vector<256x256xf32>
      %18 = arith.truncf %17 : vector<256x256xf32> to vector<256x256xbf16>
      %c0_15 = arith.constant 0 : index
      %c0_16 = arith.constant 0 : index
      %19 = vector.load %arg6[%c0_15, %c0_16] : memref<256x256xbf16, #tpu.memory_space<vmem>>, vector<256x256xbf16>
      tpu.vector_store %arg6[%c0_15, %c0_16], %18 {strides = array<i32>} : memref<256x256xbf16, #tpu.memory_space<vmem>>, vector<256x256xbf16>,
    } else {
    }
    return
  }
  func.func @transform_0(%arg0: i32, %arg1: i32, %arg2: i32) -> (i32, i32) {
    %c0_i32 = arith.constant 0 : i32
    return %arg0, %arg2 : i32, i32
  }
  func.func @transform_1(%arg0: i32, %arg1: i32, %arg2: i32) -> (i32, i32) {
    %c0_i32 = arith.constant 0 : i32
    return %arg2, %arg1 : i32, i32
  }
  func.func @transform_2(%arg0: i32, %arg1: i32, %arg2: i32) -> (i32, i32) {
    %c0_i32 = arith.constant 0 : i32
    %c0_i32_0 = arith.constant 0 : i32
    return %c0_i32, %arg1 : i32, i32
  }
  func.func @transform_3(%arg0: i32, %arg1: i32, %arg2: i32) -> (i32, i32) {
    %c0_i32 = arith.constant 0 : i32
    return %arg0, %arg1 : i32, i32
  }
}

</mosaic_0001>

<llo_original>
// kernel: tpu_custom_call.1
$region0: #{tpu_custom_call.1}
  #allocation0 [shape = 'u32[]', space=smem, size = 0x4, offset = 0x4, fixed_abs, tag = 'smem constant byte address 0x4 - core index']
  #allocation1 [shape = 'u32[144,128]{1,0:T(1,128)}', space=vmem, size = 0x12000, scoped, tag = 'internal scratch']
  #allocation2 [shape = 'f32[256,256]{1,0:T(8,128)}', space=vmem, size = 0x40000, scoped, tag = 'scratch operand']
  %s0 = inlined_call_operand.hbm [shape: bf16[512,128], index: 0, kind: input, shape index: {}]
  %s1 = inlined_call_operand.hbm [shape: bf16[128,256], index: 1, kind: input, shape index: {}]
  %s2 = inlined_call_operand.vmem [shape: f32[1,256], index: 2, kind: input, shape index: {}]
  %s3 = inlined_call_operand.hbm [shape: bf16[512,256], index: 3, kind: output, shape index: {}]
  %s4 = sld [smem:[#allocation0]]
  $region61: #{tpu_custom_call.1} parent=0
    _
  %s6 = ssub.s32 1, %s4
  %s7 = scalar_select 0, %s6, %s4
  $region1: #{tpu_custom_call.1} parent=0
    #allocation3 [shape = 'u8[131072]{0}', space=vmem, size = 0x20000, scoped, tag = 'input window, operand 0']
    #allocation4 [shape = 's32[2]{0}', space=sflag, size = 0x8, scoped, tag = 'scoped memory for tpu_custom_call.1']
    #allocation5 [shape = 's32[2]{0}', space=sflag, size = 0x8, scoped, tag = 'scoped memory for tpu_custom_call.1']
    #allocation6 [shape = 'u8[65536]{0}', space=vmem, size = 0x10000, scoped, tag = 'input window, operand 1, single buffered']
    #allocation7 [shape = 's32[1]{0}', space=sflag, size = 0x4, scoped, tag = 'scoped memory for tpu_custom_call.1']
    #allocation8 [shape = 'u8[262144]{0}', space=vmem, size = 0x40000, scoped, tag = 'output window, operand 0']
    %8 = vsyncpa [#allocation4], 0
    %s9 = scalar_lea.sflag [#allocation4], 1
    %10 = vsyncpa %s9, 0
    %11 = vsyncpa [#allocation7], 0
    %12 = vsyncpa [#allocation5], 0
    %s13 = scalar_lea.sflag [#allocation5], 1
    %14 = vsyncpa %s13, 0
    loop: start=0, step=1, limit=4
    $region2: #{tpu_custom_call.1} parent=1 // loop_pre_header
      _
    $region3: #{tpu_custom_call.1} parent=1 // loop_header
      %s16 = sphi 0, %s20
      %p17 = scmp.ge.s32.totalorder %s16, 4
      %s23 = sphi 0, %s42
      %s24 = sphi 0, %s38
      %s25 = sphi 0, %s34
      %s26 = sphi 0, %s23
      %s27 = sphi 0, %s24
      %s28 = sphi 0, %s25
      %s29 = sphi 0, %s26
      %s30 = sphi 0, %s27
      %s31 = sphi 0, %s28
      %s47 = sphi 0, %s49
      %s50 = sphi 0, %s47
      %s51 = sphi 0, %s50
      %s67 = sphi 0, %s51
      %s75 = sphi 0, %s77
      %s78 = sphi 0, %s75
      %s79 = sphi 0, %s78
      %s95 = sphi 0, %s79
      %s101 = sphi 0, %s103
      %s104 = sphi 0, %s101
      %s105 = sphi 0, %s104
      %s121 = sphi 0, %s105
      %s129 = sphi 0, %s131
      %s132 = sphi 0, %s129
      %s133 = sphi 0, %s132
      %s149 = sphi 0, %s133
    $region4: #{tpu_custom_call.1} parent=1 // loop_header_branch
      %19 = sbr.rel (%p17) target = $region8
    $region5: #{tpu_custom_call.1} parent=1 // loop_body
      %s21 = ssub.s32 %s16, 1
      %s22 = ssub.s32 %s16, 2
      %s32 = sadd.s32 1, %s25
      %p33 = scmp.ge.s32.totalorder %s32, 1
      %s34 = scalar_select %p33, 0, %s32
      %s35 = sadd.s32 1, %s24
      %s36 = scalar_select %p33, %s35, %s24
      %p37 = scmp.ge.s32.totalorder %s36, 1
      %s38 = scalar_select %p37, 0, %s36
      %s39 = sadd.s32 1, %s23
      %s40 = scalar_select %p37, %s39, %s23
      %p41 = scmp.ge.s32.totalorder %s40, 2
      %s42 = scalar_select %p41, 0, %s40
      %s43 = ssub.s32 %s23, %s42
      %s44 = ssub.s32 %s25, %s34
      %s45 = sor.u32 %s43, %s44
      %p46 = scmp.eq.s32.totalorder %s45, 0
      %s48 = sadd.s32 %s47, 1
      %s49 = scalar_select %p46, %s47, %s48
      %p52 = pneg %p46
      %p53 = scmp.eq.s32.totalorder %s16, 1
      %p54 = por %p52, %p53
      %p55 = scmp.ne.s32.totalorder %s47, %s50
      %p56 = scmp.eq.s32.totalorder %s16, 0
      %p57 = por %p55, %p56
      %p58 = scmp.ne.s32.totalorder %s47, %s50
      %p59 = scmp.eq.s32.totalorder %s21, 1
      %p60 = por %p58, %p59
      %p61 = scmp.ne.s32.totalorder %s50, %s51
      %p62 = scmp.eq.s32.totalorder %s21, 0
      %p63 = por %p61, %p62
      %p64 = scmp.ne.s32.totalorder %s50, %s51
      %p65 = scmp.eq.s32.totalorder %s22, 1
      %p66 = por %p64, %p65
      %p68 = scmp.ne.s32.totalorder %s51, %s67
      %p69 = scmp.eq.s32.totalorder %s22, 0
      %p70 = por %p68, %p69
      %s71 = ssub.s32 %s25, %s34
      %s72 = ssub.s32 %s24, %s38
      %s73 = sor.u32 %s71, %s72
      %p74 = scmp.eq.s32.totalorder %s73, 0
      %s76 = sadd.s32 %s75, 1
      %s77 = scalar_select %p74, %s75, %s76
      %p80 = pneg %p74
      %p81 = scmp.eq.s32.totalorder %s16, 1
      %p82 = por %p80, %p81
      %p83 = scmp.ne.s32.totalorder %s75, %s78
      %p84 = scmp.eq.s32.totalorder %s16, 0
      %p85 = por %p83, %p84
      %p86 = scmp.ne.s32.totalorder %s75, %s78
      %p87 = scmp.eq.s32.totalorder %s21, 1
      %p88 = por %p86, %p87
      %p89 = scmp.ne.s32.totalorder %s78, %s79
      %p90 = scmp.eq.s32.totalorder %s21, 0
      %p91 = por %p89, %p90
      %p92 = scmp.ne.s32.totalorder %s78, %s79
      %p93 = scmp.eq.s32.totalorder %s22, 1
      %p94 = por %p92, %p93
      %p96 = scmp.ne.s32.totalorder %s79, %s95
      %p97 = scmp.eq.s32.totalorder %s22, 0
      %p98 = por %p96, %p97
      %s99 = ssub.s32 %s24, %s38
      %p100 = scmp.eq.s32.totalorder %s99, 0
      %s102 = sadd.s32 %s101, 1
      %s103 = scalar_select %p100, %s101, %s102
      %p106 = pneg %p100
      %p107 = scmp.eq.s32.totalorder %s16, 1
      %p108 = por %p106, %p107
      %p109 = scmp.ne.s32.totalorder %s101, %s104
      %p110 = scmp.eq.s32.totalorder %s16, 0
      %p111 = por %p109, %p110
      %p112 = scmp.ne.s32.totalorder %s101, %s104
      %p113 = scmp.eq.s32.totalorder %s21, 1
      %p114 = por %p112, %p113
      %p115 = scmp.ne.s32.totalorder %s104, %s105
      %p116 = scmp.eq.s32.totalorder %s21, 0
      %p117 = por %p115, %p116
      %p118 = scmp.ne.s32.totalorder %s104, %s105
      %p119 = scmp.eq.s32.totalorder %s22, 1
      %p120 = por %p118, %p119
      %p122 = scmp.ne.s32.totalorder %s105, %s121
      %p123 = scmp.eq.s32.totalorder %s22, 0
      %p124 = por %p122, %p123
      %s125 = ssub.s32 %s23, %s42
      %s126 = ssub.s32 %s24, %s38
      %s127 = sor.u32 %s125, %s126
      %p128 = scmp.eq.s32.totalorder %s127, 0
      %s130 = sadd.s32 %s129, 1
      %s131 = scalar_select %p128, %s129, %s130
      %p134 = pneg %p128
      %p135 = scmp.eq.s32.totalorder %s16, 1
      %p136 = por %p134, %p135
      %p137 = scmp.ne.s32.totalorder %s129, %s132
      %p138 = scmp.eq.s32.totalorder %s16, 0
      %p139 = por %p137, %p138
      %p140 = scmp.ne.s32.totalorder %s129, %s132
      %p141 = scmp.eq.s32.totalorder %s21, 1
      %p142 = por %p140, %p141
      %p143 = scmp.ne.s32.totalorder %s132, %s133
      %p144 = scmp.eq.s32.totalorder %s21, 0
      %p145 = por %p143, %p144
      %p146 = scmp.ne.s32.totalorder %s132, %s133
      %p147 = scmp.eq.s32.totalorder %s22, 1
      %p148 = por %p146, %p147
      %p150 = scmp.ne.s32.totalorder %s133, %s149
      %p151 = scmp.eq.s32.totalorder %s22, 0
      %p152 = por %p150, %p151
      %p153 = scmp.le.s32.totalorder 1, %s16
      %p154 = scmp.lt.s32.totalorder %s16, 3
      %p155 = pnand %p153, %p154
      %p156 = pneg %p155
      // Predicated region
      $region9: #{tpu_custom_call.1} parent=5 // pred_check
        _
      $region10: #{tpu_custom_call.1} parent=5 // pred_check_branch
        %158 = sbr.rel (%p155) target = $region12
      $region11: #{tpu_custom_call.1} parent=5 // pred_region
        %s159 = ssub.s32 %s16, 1
        // Predicated region
        $region13: #{tpu_custom_call.1} parent=11 // pred_check
          %p160 = pneg %p91
        $region14: #{tpu_custom_call.1} parent=11 // pred_check_branch
          %162 = sbr.rel (%p160) target = $region16
        $region15: #{tpu_custom_call.1} parent=11 // pred_region
          %s163 = smul.u32 16, %s28
          %s164 = smul.u32 2, %s27
          %s166 = ssub.s32 2048, 2048
          %167 = vsyncadd [#allocation7], %s166
          %s168 = smul.addr %s163, 2
          %s169 = sadd.s32 %s164, %s168
          %s170 = smul.addr %s169, 64
          %s171 = scalar_lea.hbm %s1, %s170
          %s172 = sshll.u32 [#allocation6], 4
          %s173 = int_to_ptr.vmem [resolvable:$true] %s172
          %178 = dma.hbm_to_vmem [thread:$0]  %s171, 2048, %s173, [#allocation7], 128, 128, 8
        $region16: #{tpu_custom_call.1} parent=11 // pred_fallthru
          _
        // Predicated region
        $region17: #{tpu_custom_call.1} parent=11 // pred_check
          %p179 = pneg %p117
        $region18: #{tpu_custom_call.1} parent=11 // pred_check_branch
          %181 = sbr.rel (%p179) target = $region20
        $region19: #{tpu_custom_call.1} parent=11 // pred_region
          %s182 = smul.u32 2, %s27
          %p183 = scmp.lt.s32.totalorder %s182, 1
          %s184 = scalar_select %p183, %s182, 1
          %s185 = scalar_lea.vmem %s2, %s184
          %s186 = smul.u32 2, %s27
        $region20: #{tpu_custom_call.1} parent=11 // pred_fallthru
          _
      $region12: #{tpu_custom_call.1} parent=5 // pred_fallthru
        _
      %p187 = scmp.lt.s32.totalorder %s16, 2
      // Predicated region
      $region21: #{tpu_custom_call.1} parent=5 // pred_check
        %p188 = pneg %p187
      $region22: #{tpu_custom_call.1} parent=5 // pred_check_branch
        %190 = sbr.rel (%p188) target = $region24
      $region23: #{tpu_custom_call.1} parent=5 // pred_region
        // Predicated region
        $region25: #{tpu_custom_call.1} parent=23 // pred_check
          %p191 = pneg %p57
        $region26: #{tpu_custom_call.1} parent=23 // pred_check_branch
          %193 = sbr.rel (%p191) target = $region28
        $region27: #{tpu_custom_call.1} parent=23 // pred_region
          %s194 = sand.u32 %s47, 1
          %s195 = scalar_lea.sflag [#allocation4], %s194
          %s196 = sand.u32 %s47, 1
          %s197 = smul.addr %s196, 128
          %s198 = scalar_lea.vmem [#allocation3], %s197
          %s199 = smul.u32 32, %s23
          %s201 = ssub.s32 2048, 2048
          %202 = vsyncadd %s195, %s201
          %s203 = sadd.s32 %s25, %s199
          %s204 = smul.addr %s203, 64
          %s205 = scalar_lea.hbm %s0, %s204
          %s206 = sshll.u32 %s198, 4
          %s207 = int_to_ptr.vmem [resolvable:$true] %s206
          %212 = dma.hbm_to_vmem [thread:$0]  %s205, 2048, %s207, %s195, 64, 64, 4
        $region28: #{tpu_custom_call.1} parent=23 // pred_fallthru
          _
      $region24: #{tpu_custom_call.1} parent=5 // pred_fallthru
        _
      %p213 = scmp.le.s32.totalorder 1, %s16
      %p214 = scmp.lt.s32.totalorder %s16, 3
      %p215 = pnand %p213, %p214
      %p216 = pneg %p215
      // Predicated region
      $region29: #{tpu_custom_call.1} parent=5 // pred_check
        _
      $region30: #{tpu_custom_call.1} parent=5 // pred_check_branch
        %218 = sbr.rel (%p215) target = $region32
      $region31: #{tpu_custom_call.1} parent=5 // pred_region
        %s219 = ssub.s32 %s16, 1
        %s220 = sand.u32 %s50, 1
        %s221 = scalar_lea.sflag [#allocation4], %s220
        %s222 = sand.u32 %s50, 1
        %s223 = smul.addr %s222, 128
        %s224 = scalar_lea.vmem [#allocation3], %s223
        // Predicated region
        $region33: #{tpu_custom_call.1} parent=31 // pred_check
          %p225 = pneg %p63
        $region34: #{tpu_custom_call.1} parent=31 // pred_check_branch
          %227 = sbr.rel (%p225) target = $region36
        $region35: #{tpu_custom_call.1} parent=31 // pred_region
          %228 = dma.done %s221, 2048
        $region36: #{tpu_custom_call.1} parent=31 // pred_fallthru
          _
        // Predicated region
        $region37: #{tpu_custom_call.1} parent=31 // pred_check
          %p229 = pneg %p91
        $region38: #{tpu_custom_call.1} parent=31 // pred_check_branch
          %231 = sbr.rel (%p229) target = $region40
        $region39: #{tpu_custom_call.1} parent=31 // pred_region
          %232 = dma.done [#allocation7], 2048
        $region40: #{tpu_custom_call.1} parent=31 // pred_fallthru
          _
        %s233 = sand.u32 %s50, 1
        %s234 = scalar_lea.sflag [#allocation4], %s233
        %s235 = sand.u32 %s50, 1
        %s236 = smul.addr %s235, 128
        %s237 = scalar_lea.vmem [#allocation3], %s236
        %p238 = pneg %p63
        %p239 = pneg %p60
        %p240 = pneg %p91
        %p241 = pneg %p88
        %s242 = smul.u32 2, %s27
        %p243 = scmp.lt.s32.totalorder %s242, 1
        %s244 = scalar_select %p243, %s242, 1
        %s245 = scalar_lea.vmem %s2, %s244
        %p246 = pneg %p117
        %p247 = pneg %p114
        %p248 = pneg %p145
        %p249 = pneg %p142
        %s250 = sand.u32 %s132, 1
        %s251 = scalar_lea.sflag [#allocation5], %s250
        %s252 = sand.u32 %s132, 1
        %s253 = smul.addr %s252, 256
        %s254 = scalar_lea.vmem [#allocation8], %s253
        %s255 = smul.u32 32, %s26
        %s256 = smul.u32 16, %s28
        %s257 = smul.u32 2, %s27
        %s258 = smul.u32 2, %s27
        %p259 = scmp.lt.s32.totalorder %s258, 1
        %s260 = scalar_select %p259, %s258, 1
        %s261 = scalar_lea.vmem %s2, %s260
        %s262 = smul.u32 2, %s27
        %s263 = smul.u32 32, %s26
        %s264 = smul.u32 2, %s27
        %p266 = scmp.eq.s32.totalorder %s28, 0
        // Predicated region
        $region41: #{tpu_custom_call.1} parent=31 // pred_check
          %p267 = pneg %p266
        $region42: #{tpu_custom_call.1} parent=31 // pred_check_branch
          %269 = sbr.rel (%p267) target = $region44
        $region43: #{tpu_custom_call.1} parent=31 // pred_region
          %270 = vst [vmem:[#allocation2] sm:$0xff] 0.0
          %271 = vst [vmem:[#allocation2 + $0x8] sm:$0xff] 0.0
          %272 = vst [vmem:[#allocation2 + $0x10] sm:$0xff] 0.0
          %273 = vst [vmem:[#allocation2 + $0x18] sm:$0xff] 0.0
          %274 = vst [vmem:[#allocation2 + $0x20] sm:$0xff] 0.0
          %275 = vst [vmem:[#allocation2 + $0x28] sm:$0xff] 0.0
          %276 = vst [vmem:[#allocation2 + $0x30] sm:$0xff] 0.0
          %277 = vst [vmem:[#allocation2 + $0x38] sm:$0xff] 0.0
          %278 = vst [vmem:[#allocation2 + $0x40] sm:$0xff] 0.0
          %279 = vst [vmem:[#allocation2 + $0x48] sm:$0xff] 0.0
          %280 = vst [vmem:[#allocation2 + $0x50] sm:$0xff] 0.0
          %281 = vst [vmem:[#allocation2 + $0x58] sm:$0xff] 0.0
          %282 = vst [vmem:[#allocation2 + $0x60] sm:$0xff] 0.0
          %283 = vst [vmem:[#allocation2 + $0x68] sm:$0xff] 0.0
          %284 = vst [vmem:[#allocation2 + $0x70] sm:$0xff] 0.0
          %285 = vst [vmem:[#allocation2 + $0x78] sm:$0xff] 0.0
          %286 = vst [vmem:[#allocation2 + $0x80] sm:$0xff] 0.0
          %287 = vst [vmem:[#allocation2 + $0x88] sm:$0xff] 0.0
          %288 = vst [vmem:[#allocation2 + $0x90] sm:$0xff] 0.0
          %289 = vst [vmem:[#allocation2 + $0x98] sm:$0xff] 0.0
          %290 = vst [vmem:[#allocation2 + $0xa0] sm:$0xff] 0.0
          %291 = vst [vmem:[#allocation2 + $0xa8] sm:$0xff] 0.0
          %292 = vst [vmem:[#allocation2 + $0xb0] sm:$0xff] 0.0
          %293 = vst [vmem:[#allocation2 + $0xb8] sm:$0xff] 0.0
          %294 = vst [vmem:[#allocation2 + $0xc0] sm:$0xff] 0.0
          %295 = vst [vmem:[#allocation2 + $0xc8] sm:$0xff] 0.0
          %296 = vst [vmem:[#allocation2 + $0xd0] sm:$0xff] 0.0
          %297 = vst [vmem:[#allocation2 + $0xd8] sm:$0xff] 0.0
          %298 = vst [vmem:[#allocation2 + $0xe0] sm:$0xff] 0.0
          %299 = vst [vmem:[#allocation2 + $0xe8] sm:$0xff] 0.0
          %300 = vst [vmem:[#allocation2 + $0xf0] sm:$0xff] 0.0
          %301 = vst [vmem:[#allocation2 + $0xf8] sm:$0xff] 0.0
          %302 = vst [vmem:[#allocation2 + $0x100] sm:$0xff] 0.0
          %303 = vst [vmem:[#allocation2 + $0x108] sm:$0xff] 0.0
          %304 = vst [vmem:[#allocation2 + $0x110] sm:$0xff] 0.0
          %305 = vst [vmem:[#allocation2 + $0x118] sm:$0xff] 0.0
          %306 = vst [vmem:[#allocation2 + $0x120] sm:$0xff] 0.0
          %307 = vst [vmem:[#allocation2 + $0x128] sm:$0xff] 0.0
          %308 = vst [vmem:[#allocation2 + $0x130] sm:$0xff] 0.0
          %309 = vst [vmem:[#allocation2 + $0x138] sm:$0xff] 0.0
          %310 = vst [vmem:[#allocation2 + $0x140] sm:$0xff] 0.0
          %311 = vst [vmem:[#allocation2 + $0x148] sm:$0xff] 0.0
          %312 = vst [vmem:[#allocation2 + $0x150] sm:$0xff] 0.0
          %313 = vst [vmem:[#allocation2 + $0x158] sm:$0xff] 0.0
          %314 = vst [vmem:[#allocation2 + $0x160] sm:$0xff] 0.0
          %315 = vst [vmem:[#allocation2 + $0x168] sm:$0xff] 0.0
          %316 = vst [vmem:[#allocation2 + $0x170] sm:$0xff] 0.0
          %317 = vst [vmem:[#allocation2 + $0x178] sm:$0xff] 0.0
          %318 = vst [vmem:[#allocation2 + $0x180] sm:$0xff] 0.0
          %319 = vst [vmem:[#allocation2 + $0x188] sm:$0xff] 0.0
          %320 = vst [vmem:[#allocation2 + $0x190] sm:$0xff] 0.0
          %321 = vst [vmem:[#allocation2 + $0x198] sm:$0xff] 0.0
          %322 = vst [vmem:[#allocation2 + $0x1a0] sm:$0xff] 0.0
          %323 = vst [vmem:[#allocation2 + $0x1a8] sm:$0xff] 0.0
          %324 = vst [vmem:[#allocation2 + $0x1b0] sm:$0xff] 0.0
          %325 = vst [vmem:[#allocation2 + $0x1b8] sm:$0xff] 0.0
          %326 = vst [vmem:[#allocation2 + $0x1c0] sm:$0xff] 0.0
          %327 = vst [vmem:[#allocation2 + $0x1c8] sm:$0xff] 0.0
          %328 = vst [vmem:[#allocation2 + $0x1d0] sm:$0xff] 0.0
          %329 = vst [vmem:[#allocation2 + $0x1d8] sm:$0xff] 0.0
          %330 = vst [vmem:[#allocation2 + $0x1e0] sm:$0xff] 0.0
          %331 = vst [vmem:[#allocation2 + $0x1e8] sm:$0xff] 0.0
          %332 = vst [vmem:[#allocation2 + $0x1f0] sm:$0xff] 0.0
          %333 = vst [vmem:[#allocation2 + $0x1f8] sm:$0xff] 0.0
        $region44: #{tpu_custom_call.1} parent=31 // pred_fallthru
          _
        %v334 = vld [vmem:[#allocation2] sm:$0xff]
        %v335 = vld [vmem:[#allocation2 + $0x8] sm:$0xff]
        %v336 = vld [vmem:[#allocation2 + $0x10] sm:$0xff]
        %v337 = vld [vmem:[#allocation2 + $0x18] sm:$0xff]
        %v338 = vld [vmem:[#allocation2 + $0x20] sm:$0xff]
        %v339 = vld [vmem:[#allocation2 + $0x28] sm:$0xff]
        %v340 = vld [vmem:[#allocation2 + $0x30] sm:$0xff]
        %v341 = vld [vmem:[#allocation2 + $0x38] sm:$0xff]
        %v342 = vld [vmem:[#allocation2 + $0x40] sm:$0xff]
        %v343 = vld [vmem:[#allocation2 + $0x48] sm:$0xff]
        %v344 = vld [vmem:[#allocation2 + $0x50] sm:$0xff]
        %v345 = vld [vmem:[#allocation2 + $0x58] sm:$0xff]
        %v346 = vld [vmem:[#allocation2 + $0x60] sm:$0xff]
        %v347 = vld [vmem:[#allocation2 + $0x68] sm:$0xff]
        %v348 = vld [vmem:[#allocation2 + $0x70] sm:$0xff]
        %v349 = vld [vmem:[#allocation2 + $0x78] sm:$0xff]
        %v350 = vld [vmem:[#allocation2 + $0x80] sm:$0xff]
        %v351 = vld [vmem:[#allocation2 + $0x88] sm:$0xff]
        %v352 = vld [vmem:[#allocation2 + $0x90] sm:$0xff]
        %v353 = vld [vmem:[#allocation2 + $0x98] sm:$0xff]
        %v354 = vld [vmem:[#allocation2 + $0xa0] sm:$0xff]
        %v355 = vld [vmem:[#allocation2 + $0xa8] sm:$0xff]
        %v356 = vld [vmem:[#allocation2 + $0xb0] sm:$0xff]
        %v357 = vld [vmem:[#allocation2 + $0xb8] sm:$0xff]
        %v358 = vld [vmem:[#allocation2 + $0xc0] sm:$0xff]
        %v359 = vld [vmem:[#allocation2 + $0xc8] sm:$0xff]
        %v360 = vld [vmem:[#allocation2 + $0xd0] sm:$0xff]
        %v361 = vld [vmem:[#allocation2 + $0xd8] sm:$0xff]
        %v362 = vld [vmem:[#allocation2 + $0xe0] sm:$0xff]
        %v363 = vld [vmem:[#allocation2 + $0xe8] sm:$0xff]
        %v364 = vld [vmem:[#allocation2 + $0xf0] sm:$0xff]
        %v365 = vld [vmem:[#allocation2 + $0xf8] sm:$0xff]
        %v366 = vld [vmem:[#allocation2 + $0x100] sm:$0xff]
        %v367 = vld [vmem:[#allocation2 + $0x108] sm:$0xff]
        %v368 = vld [vmem:[#allocation2 + $0x110] sm:$0xff]
        %v369 = vld [vmem:[#allocation2 + $0x118] sm:$0xff]
        %v370 = vld [vmem:[#allocation2 + $0x120] sm:$0xff]
        %v371 = vld [vmem:[#allocation2 + $0x128] sm:$0xff]
        %v372 = vld [vmem:[#allocation2 + $0x130] sm:$0xff]
        %v373 = vld [vmem:[#allocation2 + $0x138] sm:$0xff]
        %v374 = vld [vmem:[#allocation2 + $0x140] sm:$0xff]
        %v375 = vld [vmem:[#allocation2 + $0x148] sm:$0xff]
        %v376 = vld [vmem:[#allocation2 + $0x150] sm:$0xff]
        %v377 = vld [vmem:[#allocation2 + $0x158] sm:$0xff]
        %v378 = vld [vmem:[#allocation2 + $0x160] sm:$0xff]
        %v379 = vld [vmem:[#allocation2 + $0x168] sm:$0xff]
        %v380 = vld [vmem:[#allocation2 + $0x170] sm:$0xff]
        %v381 = vld [vmem:[#allocation2 + $0x178] sm:$0xff]
        %v382 = vld [vmem:[#allocation2 + $0x180] sm:$0xff]
        %v383 = vld [vmem:[#allocation2 + $0x188] sm:$0xff]
        %v384 = vld [vmem:[#allocation2 + $0x190] sm:$0xff]
        %v385 = vld [vmem:[#allocation2 + $0x198] sm:$0xff]
        %v386 = vld [vmem:[#allocation2 + $0x1a0] sm:$0xff]
        %v387 = vld [vmem:[#allocation2 + $0x1a8] sm:$0xff]
        %v388 = vld [vmem:[#allocation2 + $0x1b0] sm:$0xff]
        %v389 = vld [vmem:[#allocation2 + $0x1b8] sm:$0xff]
        %v390 = vld [vmem:[#allocation2 + $0x1c0] sm:$0xff]
        %v391 = vld [vmem:[#allocation2 + $0x1c8] sm:$0xff]
        %v392 = vld [vmem:[#allocation2 + $0x1d0] sm:$0xff]
        %v393 = vld [vmem:[#allocation2 + $0x1d8] sm:$0xff]
        %v394 = vld [vmem:[#allocation2 + $0x1e0] sm:$0xff]
        %v395 = vld [vmem:[#allocation2 + $0x1e8] sm:$0xff]
        %v396 = vld [vmem:[#allocation2 + $0x1f0] sm:$0xff]
        %v397 = vld [vmem:[#allocation2 + $0x1f8] sm:$0xff]
        %v398 = vld [vmem:[%s224] sm:$0xf]
        %v399 = vld [vmem:[%s224 + $0x4] sm:$0xf]
        %v400 = vld [vmem:[%s224 + $0x8] sm:$0xf]
        %v401 = vld [vmem:[%s224 + $0xc] sm:$0xf]
        %v402 = vld [vmem:[%s224 + $0x10] sm:$0xf]
        %v403 = vld [vmem:[%s224 + $0x14] sm:$0xf]
        %v404 = vld [vmem:[%s224 + $0x18] sm:$0xf]
        %v405 = vld [vmem:[%s224 + $0x1c] sm:$0xf]
        %v406 = vld [vmem:[%s224 + $0x20] sm:$0xf]
        %v407 = vld [vmem:[%s224 + $0x24] sm:$0xf]
        %v408 = vld [vmem:[%s224 + $0x28] sm:$0xf]
        %v409 = vld [vmem:[%s224 + $0x2c] sm:$0xf]
        %v410 = vld [vmem:[%s224 + $0x30] sm:$0xf]
        %v411 = vld [vmem:[%s224 + $0x34] sm:$0xf]
        %v412 = vld [vmem:[%s224 + $0x38] sm:$0xf]
        %v413 = vld [vmem:[%s224 + $0x3c] sm:$0xf]
        %v414 = vld [vmem:[%s224 + $0x40] sm:$0xf]
        %v415 = vld [vmem:[%s224 + $0x44] sm:$0xf]
        %v416 = vld [vmem:[%s224 + $0x48] sm:$0xf]
        %v417 = vld [vmem:[%s224 + $0x4c] sm:$0xf]
        %v418 = vld [vmem:[%s224 + $0x50] sm:$0xf]
        %v419 = vld [vmem:[%s224 + $0x54] sm:$0xf]
        %v420 = vld [vmem:[%s224 + $0x58] sm:$0xf]
        %v421 = vld [vmem:[%s224 + $0x5c] sm:$0xf]
        %v422 = vld [vmem:[%s224 + $0x60] sm:$0xf]
        %v423 = vld [vmem:[%s224 + $0x64] sm:$0xf]
        %v424 = vld [vmem:[%s224 + $0x68] sm:$0xf]
        %v425 = vld [vmem:[%s224 + $0x6c] sm:$0xf]
        %v426 = vld [vmem:[%s224 + $0x70] sm:$0xf]
        %v427 = vld [vmem:[%s224 + $0x74] sm:$0xf]
        %v428 = vld [vmem:[%s224 + $0x78] sm:$0xf]
        %v429 = vld [vmem:[%s224 + $0x7c] sm:$0xf]
        %v430 = vld [vmem:[#allocation6] sm:$0xff]
        %v431 = vld [vmem:[#allocation6 + $0x8] sm:$0xff]
        %v432 = vld [vmem:[#allocation6 + $0x10] sm:$0xff]
        %v433 = vld [vmem:[#allocation6 + $0x18] sm:$0xff]
        %v434 = vld [vmem:[#allocation6 + $0x20] sm:$0xff]
        %v435 = vld [vmem:[#allocation6 + $0x28] sm:$0xff]
        %v436 = vld [vmem:[#allocation6 + $0x30] sm:$0xff]
        %v437 = vld [vmem:[#allocation6 + $0x38] sm:$0xff]
        %v438 = vld [vmem:[#allocation6 + $0x40] sm:$0xff]
        %v439 = vld [vmem:[#allocation6 + $0x48] sm:$0xff]
        %v440 = vld [vmem:[#allocation6 + $0x50] sm:$0xff]
        %v441 = vld [vmem:[#allocation6 + $0x58] sm:$0xff]
        %v442 = vld [vmem:[#allocation6 + $0x60] sm:$0xff]
        %v443 = vld [vmem:[#allocation6 + $0x68] sm:$0xff]
        %v444 = vld [vmem:[#allocation6 + $0x70] sm:$0xff]
        %v445 = vld [vmem:[#allocation6 + $0x78] sm:$0xff]
        %v478 = vunpack.c.l.b16 %v398
        %v479 = vunpack.c.l.b16 %v399
        %v480 = vunpack.c.l.b16 %v400
        %v481 = vunpack.c.l.b16 %v401
        %v482 = vunpack.c.l.b16 %v402
        %v483 = vunpack.c.l.b16 %v403
        %v484 = vunpack.c.l.b16 %v404
        %v485 = vunpack.c.l.b16 %v405
        %v486 = vunpack.c.l.b16 %v406
        %v487 = vunpack.c.l.b16 %v407
        %v488 = vunpack.c.l.b16 %v408
        %v489 = vunpack.c.l.b16 %v409
        %v490 = vunpack.c.l.b16 %v410
        %v491 = vunpack.c.l.b16 %v411
        %v492 = vunpack.c.l.b16 %v412
        %v493 = vunpack.c.l.b16 %v413
        %v494 = vunpack.c.l.b16 %v414
        %v495 = vunpack.c.l.b16 %v415
        %v496 = vunpack.c.l.b16 %v416
        %v497 = vunpack.c.l.b16 %v417
        %v498 = vunpack.c.l.b16 %v418
        %v499 = vunpack.c.l.b16 %v419
        %v500 = vunpack.c.l.b16 %v420
        %v501 = vunpack.c.l.b16 %v421
        %v502 = vunpack.c.l.b16 %v422
        %v503 = vunpack.c.l.b16 %v423
        %v504 = vunpack.c.l.b16 %v424
        %v505 = vunpack.c.l.b16 %v425
        %v506 = vunpack.c.l.b16 %v426
        %v507 = vunpack.c.l.b16 %v427
        %v508 = vunpack.c.l.b16 %v428
        %v509 = vunpack.c.l.b16 %v429
        %v510 = vpack.c.b16 %v479, %v478
        %v511 = vpack.c.b16 %v481, %v480
        %v512 = vpack.c.b16 %v483, %v482
        %v513 = vpack.c.b16 %v485, %v484
        %v514 = vpack.c.b16 %v487, %v486
        %v515 = vpack.c.b16 %v489, %v488
        %v516 = vpack.c.b16 %v491, %v490
        %v517 = vpack.c.b16 %v493, %v492
        %v518 = vpack.c.b16 %v495, %v494
        %v519 = vpack.c.b16 %v497, %v496
        %v520 = vpack.c.b16 %v499, %v498
        %v521 = vpack.c.b16 %v501, %v500
        %v522 = vpack.c.b16 %v503, %v502
        %v523 = vpack.c.b16 %v505, %v504
        %v524 = vpack.c.b16 %v507, %v506
        %v525 = vpack.c.b16 %v509, %v508
        %v558 = vunpack.c.l.b16 %v430
        %v559 = vunpack.c.h.b16 %v430
        %v560 = vunpack.c.l.b16 %v431
        %v561 = vunpack.c.h.b16 %v431
        %v562 = vunpack.c.l.b16 %v432
        %v563 = vunpack.c.h.b16 %v432
        %v564 = vunpack.c.l.b16 %v433
        %v565 = vunpack.c.h.b16 %v433
        %v566 = vunpack.c.l.b16 %v434
        %v567 = vunpack.c.h.b16 %v434
        %v568 = vunpack.c.l.b16 %v435
        %v569 = vunpack.c.h.b16 %v435
        %v570 = vunpack.c.l.b16 %v436
        %v571 = vunpack.c.h.b16 %v436
        %v572 = vunpack.c.l.b16 %v437
        %v573 = vunpack.c.h.b16 %v437
        %v574 = vunpack.c.l.b16 %v438
        %v575 = vunpack.c.h.b16 %v438
        %v576 = vunpack.c.l.b16 %v439
        %v577 = vunpack.c.h.b16 %v439
        %v578 = vunpack.c.l.b16 %v440
        %v579 = vunpack.c.h.b16 %v440
        %v580 = vunpack.c.l.b16 %v441
        %v581 = vunpack.c.h.b16 %v441
        %v582 = vunpack.c.l.b16 %v442
        %v583 = vunpack.c.h.b16 %v442
        %v584 = vunpack.c.l.b16 %v443
        %v585 = vunpack.c.h.b16 %v443
        %v586 = vunpack.c.l.b16 %v444
        %v587 = vunpack.c.h.b16 %v444
        %v588 = vunpack.c.l.b16 %v445
        %v589 = vunpack.c.h.b16 %v445
        %v590 = vpack.c.b16 %v560, %v558
        %v591 = vpack.c.b16 %v561, %v559
        %v592 = vpack.c.b16 %v564, %v562
        %v593 = vpack.c.b16 %v565, %v563
        %v594 = vpack.c.b16 %v568, %v566
        %v595 = vpack.c.b16 %v569, %v567
        %v596 = vpack.c.b16 %v572, %v570
        %v597 = vpack.c.b16 %v573, %v571
        %v598 = vpack.c.b16 %v576, %v574
        %v599 = vpack.c.b16 %v577, %v575
        %v600 = vpack.c.b16 %v580, %v578
        %v601 = vpack.c.b16 %v581, %v579
        %v602 = vpack.c.b16 %v584, %v582
        %v603 = vpack.c.b16 %v585, %v583
        %v604 = vpack.c.b16 %v588, %v586
        %v605 = vpack.c.b16 %v589, %v587
        %622 = vmatprep.subr.bf16.mxu0 %v591
        %623 = vmatpush1.bf16.msra.mxu0 %v590
        %624 = vmatprep.subr.bf16.mxu0 %v593
        %625 = vmatpush1.bf16.msra.mxu0 %v592
        %626 = vmatprep.subr.bf16.mxu0 %v595
        %627 = vmatpush1.bf16.msra.mxu0 %v594
        %628 = vmatprep.subr.bf16.mxu0 %v597
        %629 = vmatpush1.bf16.msra.mxu0 %v596
        %630 = vmatprep.subr.bf16.mxu0 %v599
        %631 = vmatpush1.bf16.msra.mxu0 %v598
        %632 = vmatprep.subr.bf16.mxu0 %v601
        %633 = vmatpush1.bf16.msra.mxu0 %v600
        %634 = vmatprep.subr.bf16.mxu0 %v603
        %635 = vmatpush1.bf16.msra.mxu0 %v602
        %636 = vmatprep.subr.bf16.mxu0 %v605
        %637 = vmatpush1.bf16.msra.mxu0 %v604
        %638 = vmatprep.subr.bf16.mxu0 0
        %639 = vmatpush1.bf16.msra.mxu0 0
        %640 = vmatprep.subr.bf16.mxu0 0
        %641 = vmatpush1.bf16.msra.mxu0 0
        %642 = vmatprep.subr.bf16.mxu0 0
        %643 = vmatpush1.bf16.msra.mxu0 0
        %644 = vmatprep.subr.bf16.mxu0 0
        %645 = vmatpush1.bf16.msra.mxu0 0
        %646 = vmatprep.subr.bf16.mxu0 0
        %647 = vmatpush1.bf16.msra.mxu0 0
        %648 = vmatprep.subr.bf16.mxu0 0
        %649 = vmatpush1.bf16.msra.mxu0 0
        %650 = vmatprep.subr.bf16.mxu0 0
        %651 = vmatpush1.bf16.msra.mxu0 0
        %652 = vmatprep.subr.bf16.mxu0 0
        %653 = vmatpush1.bf16.msra.mxu0 0
        %654 = vmatprep.mubr.bf16.mxu0 0
        %655 = vmatmul.mubr.bf16.gmra.mrb[0].mxu0 %v510
        %v656 = vpop.f32.mrb[0].mxu0
        %v657 = vadd.f32 0.0, %v656
        %v658 = vpop.f32.mrb[0].mxu0
        %v659 = vadd.f32 0.0, %v658
        %v660 = vpop.f32.mrb[0].mxu0
        %v661 = vadd.f32 0.0, %v660
        %v662 = vpop.f32.mrb[0].mxu0
        %v663 = vadd.f32 0.0, %v662
        %664 = vmatprep.mubr.bf16.mxu0 0
        %665 = vmatmul.mubr.bf16.gmra.mrb[0].mxu0 %v511
        %v666 = vpop.f32.mrb[0].mxu0
        %v667 = vadd.f32 0.0, %v666
        %v668 = vpop.f32.mrb[0].mxu0
        %v669 = vadd.f32 0.0, %v668
        %v670 = vpop.f32.mrb[0].mxu0
        %v671 = vadd.f32 0.0, %v670
        %v672 = vpop.f32.mrb[0].mxu0
        %v673 = vadd.f32 0.0, %v672
        %674 = vmatprep.mubr.bf16.mxu0 0
        %675 = vmatmul.mubr.bf16.gmra.mrb[0].mxu0 %v512
        %v676 = vpop.f32.mrb[0].mxu0
        %v677 = vadd.f32 0.0, %v676
        %v678 = vpop.f32.mrb[0].mxu0
        %v679 = vadd.f32 0.0, %v678
        %v680 = vpop.f32.mrb[0].mxu0
        %v681 = vadd.f32 0.0, %v680
        %v682 = vpop.f32.mrb[0].mxu0
        %v683 = vadd.f32 0.0, %v682
        %684 = vmatprep.mubr.bf16.mxu0 0
        %685 = vmatmul.mubr.bf16.gmra.mrb[0].mxu0 %v513
        %v686 = vpop.f32.mrb[0].mxu0
        %v687 = vadd.f32 0.0, %v686
        %v688 = vpop.f32.mrb[0].mxu0
        %v689 = vadd.f32 0.0, %v688
        %v690 = vpop.f32.mrb[0].mxu0
        %v691 = vadd.f32 0.0, %v690
        %v692 = vpop.f32.mrb[0].mxu0
        %v693 = vadd.f32 0.0, %v692
        %694 = vmatprep.mubr.bf16.mxu0 0
        %695 = vmatmul.mubr.bf16.gmra.mrb[0].mxu0 %v514
        %v696 = vpop.f32.mrb[0].mxu0
        %v697 = vadd.f32 0.0, %v696
        %v698 = vpop.f32.mrb[0].mxu0
        %v699 = vadd.f32 0.0, %v698
        %v700 = vpop.f32.mrb[0].mxu0
        %v701 = vadd.f32 0.0, %v700
        %v702 = vpop.f32.mrb[0].mxu0
        %v703 = vadd.f32 0.0, %v702
        %704 = vmatprep.mubr.bf16.mxu0 0
        %705 = vmatmul.mubr.bf16.gmra.mrb[0].mxu0 %v515
        %v706 = vpop.f32.mrb[0].mxu0
        %v707 = vadd.f32 0.0, %v706
        %v708 = vpop.f32.mrb[0].mxu0
        %v709 = vadd.f32 0.0, %v708
        %v710 = vpop.f32.mrb[0].mxu0
        %v711 = vadd.f32 0.0, %v710
        %v712 = vpop.f32.mrb[0].mxu0
        %v713 = vadd.f32 0.0, %v712
        %714 = vmatprep.mubr.bf16.mxu0 0
        %715 = vmatmul.mubr.bf16.gmra.mrb[0].mxu0 %v516
        %v716 = vpop.f32.mrb[0].mxu0
        %v717 = vadd.f32 0.0, %v716
        %v718 = vpop.f32.mrb[0].mxu0
        %v719 = vadd.f32 0.0, %v718
        %v720 = vpop.f32.mrb[0].mxu0
        %v721 = vadd.f32 0.0, %v720
        %v722 = vpop.f32.mrb[0].mxu0
        %v723 = vadd.f32 0.0, %v722
        %724 = vmatprep.mubr.bf16.mxu0 0
        %725 = vmatmul.mubr.bf16.gmra.mrb[0].mxu0 %v517
        %v726 = vpop.f32.mrb[0].mxu0
        %v727 = vadd.f32 0.0, %v726
        %v728 = vpop.f32.mrb[0].mxu0
        %v729 = vadd.f32 0.0, %v728
        %v730 = vpop.f32.mrb[0].mxu0
        %v731 = vadd.f32 0.0, %v730
        %v732 = vpop.f32.mrb[0].mxu0
        %v733 = vadd.f32 0.0, %v732
        %734 = vmatprep.mubr.bf16.mxu0 0
        %735 = vmatmul.mubr.bf16.gmra.mrb[0].mxu0 %v518
        %v736 = vpop.f32.mrb[0].mxu0
        %v737 = vadd.f32 0.0, %v736
        %v738 = vpop.f32.mrb[0].mxu0
        %v739 = vadd.f32 0.0, %v738
        %v740 = vpop.f32.mrb[0].mxu0
        %v741 = vadd.f32 0.0, %v740
        %v742 = vpop.f32.mrb[0].mxu0
        %v743 = vadd.f32 0.0, %v742
        %744 = vmatprep.mubr.bf16.mxu0 0
        %745 = vmatmul.mubr.bf16.gmra.mrb[0].mxu0 %v519
        %v746 = vpop.f32.mrb[0].mxu0
        %v747 = vadd.f32 0.0, %v746
        %v748 = vpop.f32.mrb[0].mxu0
        %v749 = vadd.f32 0.0, %v748
        %v750 = vpop.f32.mrb[0].mxu0
        %v751 = vadd.f32 0.0, %v750
        %v752 = vpop.f32.mrb[0].mxu0
        %v753 = vadd.f32 0.0, %v752
        %754 = vmatprep.mubr.bf16.mxu0 0
        %755 = vmatmul.mubr.bf16.gmra.mrb[0].mxu0 %v520
        %v756 = vpop.f32.mrb[0].mxu0
        %v757 = vadd.f32 0.0, %v756
        %v758 = vpop.f32.mrb[0].mxu0
        %v759 = vadd.f32 0.0, %v758
        %v760 = vpop.f32.mrb[0].mxu0
        %v761 = vadd.f32 0.0, %v760
        %v762 = vpop.f32.mrb[0].mxu0
        %v763 = vadd.f32 0.0, %v762
        %764 = vmatprep.mubr.bf16.mxu0 0
        %765 = vmatmul.mubr.bf16.gmra.mrb[0].mxu0 %v521
        %v766 = vpop.f32.mrb[0].mxu0
        %v767 = vadd.f32 0.0, %v766
        %v768 = vpop.f32.mrb[0].mxu0
        %v769 = vadd.f32 0.0, %v768
        %v770 = vpop.f32.mrb[0].mxu0
        %v771 = vadd.f32 0.0, %v770
        %v772 = vpop.f32.mrb[0].mxu0
        %v773 = vadd.f32 0.0, %v772
        %774 = vmatprep.mubr.bf16.mxu0 0
        %775 = vmatmul.mubr.bf16.gmra.mrb[0].mxu0 %v522
        %v776 = vpop.f32.mrb[0].mxu0
        %v777 = vadd.f32 0.0, %v776
        %v778 = vpop.f32.mrb[0].mxu0
        %v779 = vadd.f32 0.0, %v778
        %v780 = vpop.f32.mrb[0].mxu0
        %v781 = vadd.f32 0.0, %v780
        %v782 = vpop.f32.mrb[0].mxu0
        %v783 = vadd.f32 0.0, %v782
        %784 = vmatprep.mubr.bf16.mxu0 0
        %785 = vmatmul.mubr.bf16.gmra.mrb[0].mxu0 %v523
        %v786 = vpop.f32.mrb[0].mxu0
        %v787 = vadd.f32 0.0, %v786
        %v788 = vpop.f32.mrb[0].mxu0
        %v789 = vadd.f32 0.0, %v788
        %v790 = vpop.f32.mrb[0].mxu0
        %v791 = vadd.f32 0.0, %v790
        %v792 = vpop.f32.mrb[0].mxu0
        %v793 = vadd.f32 0.0, %v792
        %794 = vmatprep.mubr.bf16.mxu0 0
        %795 = vmatmul.mubr.bf16.gmra.mrb[0].mxu0 %v524
        %v796 = vpop.f32.mrb[0].mxu0
        %v797 = vadd.f32 0.0, %v796
        %v798 = vpop.f32.mrb[0].mxu0
        %v799 = vadd.f32 0.0, %v798
        %v800 = vpop.f32.mrb[0].mxu0
        %v801 = vadd.f32 0.0, %v800
        %v802 = vpop.f32.mrb[0].mxu0
        %v803 = vadd.f32 0.0, %v802
        %804 = vmatprep.mubr.bf16.mxu0 0
        %805 = vmatmul.mubr.bf16.gmra.mrb[0].mxu0 %v525
        %v806 = vpop.f32.mrb[0].mxu0
        %v807 = vadd.f32 0.0, %v806
        %v808 = vpop.f32.mrb[0].mxu0
        %v809 = vadd.f32 0.0, %v808
        %v810 = vpop.f32.mrb[0].mxu0
        %v811 = vadd.f32 0.0, %v810
        %v812 = vpop.f32.mrb[0].mxu0
        %v813 = vadd.f32 0.0, %v812
        %814 = vdwg.mxu0
        %v815 = vadd.f32 %v334, %v657
        %v816 = vadd.f32 %v335, %v659
        %v817 = vadd.f32 %v336, %v661
        %v818 = vadd.f32 %v337, %v663
        %v819 = vadd.f32 %v338, %v667
        %v820 = vadd.f32 %v339, %v669
        %v821 = vadd.f32 %v340, %v671
        %v822 = vadd.f32 %v341, %v673
        %v823 = vadd.f32 %v342, %v677
        %v824 = vadd.f32 %v343, %v679
        %v825 = vadd.f32 %v344, %v681
        %v826 = vadd.f32 %v345, %v683
        %v827 = vadd.f32 %v346, %v687
        %v828 = vadd.f32 %v347, %v689
        %v829 = vadd.f32 %v348, %v691
        %v830 = vadd.f32 %v349, %v693
        %v831 = vadd.f32 %v350, %v697
        %v832 = vadd.f32 %v351, %v699
        %v833 = vadd.f32 %v352, %v701
        %v834 = vadd.f32 %v353, %v703
        %v835 = vadd.f32 %v354, %v707
        %v836 = vadd.f32 %v355, %v709
        %v837 = vadd.f32 %v356, %v711
        %v838 = vadd.f32 %v357, %v713
        %v839 = vadd.f32 %v358, %v717
        %v840 = vadd.f32 %v359, %v719
        %v841 = vadd.f32 %v360, %v721
        %v842 = vadd.f32 %v361, %v723
        %v843 = vadd.f32 %v362, %v727
        %v844 = vadd.f32 %v363, %v729
        %v845 = vadd.f32 %v364, %v731
        %v846 = vadd.f32 %v365, %v733
        %v847 = vadd.f32 %v366, %v737
        %v848 = vadd.f32 %v367, %v739
        %v849 = vadd.f32 %v368, %v741
        %v850 = vadd.f32 %v369, %v743
        %v851 = vadd.f32 %v370, %v747
        %v852 = vadd.f32 %v371, %v749
        %v853 = vadd.f32 %v372, %v751
        %v854 = vadd.f32 %v373, %v753
        %v855 = vadd.f32 %v374, %v757
        %v856 = vadd.f32 %v375, %v759
        %v857 = vadd.f32 %v376, %v761
        %v858 = vadd.f32 %v377, %v763
        %v859 = vadd.f32 %v378, %v767
        %v860 = vadd.f32 %v379, %v769
        %v861 = vadd.f32 %v380, %v771
        %v862 = vadd.f32 %v381, %v773
        %v863 = vadd.f32 %v382, %v777
        %v864 = vadd.f32 %v383, %v779
        %v865 = vadd.f32 %v384, %v781
        %v866 = vadd.f32 %v385, %v783
        %v867 = vadd.f32 %v386, %v787
        %v868 = vadd.f32 %v387, %v789
        %v869 = vadd.f32 %v388, %v791
        %v870 = vadd.f32 %v389, %v793
        %v871 = vadd.f32 %v390, %v797
        %v872 = vadd.f32 %v391, %v799
        %v873 = vadd.f32 %v392, %v801
        %v874 = vadd.f32 %v393, %v803
        %v875 = vadd.f32 %v394, %v807
        %v876 = vadd.f32 %v395, %v809
        %v877 = vadd.f32 %v396, %v811
        %v878 = vadd.f32 %v397, %v813
        %879 = vst [vmem:[#allocation2] sm:$0xff] %v815
        %880 = vst [vmem:[#allocation2 + $0x8] sm:$0xff] %v816
        %881 = vst [vmem:[#allocation2 + $0x10] sm:$0xff] %v817
        %882 = vst [vmem:[#allocation2 + $0x18] sm:$0xff] %v818
        %883 = vst [vmem:[#allocation2 + $0x20] sm:$0xff] %v819
        %884 = vst [vmem:[#allocation2 + $0x28] sm:$0xff] %v820
        %885 = vst [vmem:[#allocation2 + $0x30] sm:$0xff] %v821
        %886 = vst [vmem:[#allocation2 + $0x38] sm:$0xff] %v822
        %887 = vst [vmem:[#allocation2 + $0x40] sm:$0xff] %v823
        %888 = vst [vmem:[#allocation2 + $0x48] sm:$0xff] %v824
        %889 = vst [vmem:[#allocation2 + $0x50] sm:$0xff] %v825
        %890 = vst [vmem:[#allocation2 + $0x58] sm:$0xff] %v826
        %891 = vst [vmem:[#allocation2 + $0x60] sm:$0xff] %v827
        %892 = vst [vmem:[#allocation2 + $0x68] sm:$0xff] %v828
        %893 = vst [vmem:[#allocation2 + $0x70] sm:$0xff] %v829
        %894 = vst [vmem:[#allocation2 + $0x78] sm:$0xff] %v830
        %895 = vst [vmem:[#allocation2 + $0x80] sm:$0xff] %v831
        %896 = vst [vmem:[#allocation2 + $0x88] sm:$0xff] %v832
        %897 = vst [vmem:[#allocation2 + $0x90] sm:$0xff] %v833
        %898 = vst [vmem:[#allocation2 + $0x98] sm:$0xff] %v834
        %899 = vst [vmem:[#allocation2 + $0xa0] sm:$0xff] %v835
        %900 = vst [vmem:[#allocation2 + $0xa8] sm:$0xff] %v836
        %901 = vst [vmem:[#allocation2 + $0xb0] sm:$0xff] %v837
        %902 = vst [vmem:[#allocation2 + $0xb8] sm:$0xff] %v838
        %903 = vst [vmem:[#allocation2 + $0xc0] sm:$0xff] %v839
        %904 = vst [vmem:[#allocation2 + $0xc8] sm:$0xff] %v840
        %905 = vst [vmem:[#allocation2 + $0xd0] sm:$0xff] %v841
        %906 = vst [vmem:[#allocation2 + $0xd8] sm:$0xff] %v842
        %907 = vst [vmem:[#allocation2 + $0xe0] sm:$0xff] %v843
        %908 = vst [vmem:[#allocation2 + $0xe8] sm:$0xff] %v844
        %909 = vst [vmem:[#allocation2 + $0xf0] sm:$0xff] %v845
        %910 = vst [vmem:[#allocation2 + $0xf8] sm:$0xff] %v846
        %911 = vst [vmem:[#allocation2 + $0x100] sm:$0xff] %v847
        %912 = vst [vmem:[#allocation2 + $0x108] sm:$0xff] %v848
        %913 = vst [vmem:[#allocation2 + $0x110] sm:$0xff] %v849
        %914 = vst [vmem:[#allocation2 + $0x118] sm:$0xff] %v850
        %915 = vst [vmem:[#allocation2 + $0x120] sm:$0xff] %v851
        %916 = vst [vmem:[#allocation2 + $0x128] sm:$0xff] %v852
        %917 = vst [vmem:[#allocation2 + $0x130] sm:$0xff] %v853
        %918 = vst [vmem:[#allocation2 + $0x138] sm:$0xff] %v854
        %919 = vst [vmem:[#allocation2 + $0x140] sm:$0xff] %v855
        %920 = vst [vmem:[#allocation2 + $0x148] sm:$0xff] %v856
        %921 = vst [vmem:[#allocation2 + $0x150] sm:$0xff] %v857
        %922 = vst [vmem:[#allocation2 + $0x158] sm:$0xff] %v858
        %923 = vst [vmem:[#allocation2 + $0x160] sm:$0xff] %v859
        %924 = vst [vmem:[#allocation2 + $0x168] sm:$0xff] %v860
        %925 = vst [vmem:[#allocation2 + $0x170] sm:$0xff] %v861
        %926 = vst [vmem:[#allocation2 + $0x178] sm:$0xff] %v862
        %927 = vst [vmem:[#allocation2 + $0x180] sm:$0xff] %v863
        %928 = vst [vmem:[#allocation2 + $0x188] sm:$0xff] %v864
        %929 = vst [vmem:[#allocation2 + $0x190] sm:$0xff] %v865
        %930 = vst [vmem:[#allocation2 + $0x198] sm:$0xff] %v866
        %931 = vst [vmem:[#allocation2 + $0x1a0] sm:$0xff] %v867
        %932 = vst [vmem:[#allocation2 + $0x1a8] sm:$0xff] %v868
        %933 = vst [vmem:[#allocation2 + $0x1b0] sm:$0xff] %v869
        %934 = vst [vmem:[#allocation2 + $0x1b8] sm:$0xff] %v870
        %935 = vst [vmem:[#allocation2 + $0x1c0] sm:$0xff] %v871
        %936 = vst [vmem:[#allocation2 + $0x1c8] sm:$0xff] %v872
        %937 = vst [vmem:[#allocation2 + $0x1d0] sm:$0xff] %v873
        %938 = vst [vmem:[#allocation2 + $0x1d8] sm:$0xff] %v874
        %939 = vst [vmem:[#allocation2 + $0x1e0] sm:$0xff] %v875
        %940 = vst [vmem:[#allocation2 + $0x1e8] sm:$0xff] %v876
        %941 = vst [vmem:[#allocation2 + $0x1f0] sm:$0xff] %v877
        %942 = vst [vmem:[#allocation2 + $0x1f8] sm:$0xff] %v878
        // Predicated region
        $region45: #{tpu_custom_call.1} parent=31 // pred_check
          %p943 = pneg %p266
        $region46: #{tpu_custom_call.1} parent=31 // pred_check_branch
          %945 = sbr.rel (%p943) target = $region48
        $region47: #{tpu_custom_call.1} parent=31 // pred_region
          %v946 = vld [vmem:[#allocation2] sm:$0xff]
          %v947 = vld [vmem:[#allocation2 + $0x8] sm:$0xff]
          %v948 = vld [vmem:[#allocation2 + $0x10] sm:$0xff]
          %v949 = vld [vmem:[#allocation2 + $0x18] sm:$0xff]
          %v950 = vld [vmem:[#allocation2 + $0x20] sm:$0xff]
          %v951 = vld [vmem:[#allocation2 + $0x28] sm:$0xff]
          %v952 = vld [vmem:[#allocation2 + $0x30] sm:$0xff]
          %v953 = vld [vmem:[#allocation2 + $0x38] sm:$0xff]
          %v954 = vld [vmem:[#allocation2 + $0x40] sm:$0xff]
          %v955 = vld [vmem:[#allocation2 + $0x48] sm:$0xff]
          %v956 = vld [vmem:[#allocation2 + $0x50] sm:$0xff]
          %v957 = vld [vmem:[#allocation2 + $0x58] sm:$0xff]
          %v958 = vld [vmem:[#allocation2 + $0x60] sm:$0xff]
          %v959 = vld [vmem:[#allocation2 + $0x68] sm:$0xff]
          %v960 = vld [vmem:[#allocation2 + $0x70] sm:$0xff]
          %v961 = vld [vmem:[#allocation2 + $0x78] sm:$0xff]
          %v962 = vld [vmem:[#allocation2 + $0x80] sm:$0xff]
          %v963 = vld [vmem:[#allocation2 + $0x88] sm:$0xff]
          %v964 = vld [vmem:[#allocation2 + $0x90] sm:$0xff]
          %v965 = vld [vmem:[#allocation2 + $0x98] sm:$0xff]
          %v966 = vld [vmem:[#allocation2 + $0xa0] sm:$0xff]
          %v967 = vld [vmem:[#allocation2 + $0xa8] sm:$0xff]
          %v968 = vld [vmem:[#allocation2 + $0xb0] sm:$0xff]
          %v969 = vld [vmem:[#allocation2 + $0xb8] sm:$0xff]
          %v970 = vld [vmem:[#allocation2 + $0xc0] sm:$0xff]
          %v971 = vld [vmem:[#allocation2 + $0xc8] sm:$0xff]
          %v972 = vld [vmem:[#allocation2 + $0xd0] sm:$0xff]
          %v973 = vld [vmem:[#allocation2 + $0xd8] sm:$0xff]
          %v974 = vld [vmem:[#allocation2 + $0xe0] sm:$0xff]
          %v975 = vld [vmem:[#allocation2 + $0xe8] sm:$0xff]
          %v976 = vld [vmem:[#allocation2 + $0xf0] sm:$0xff]
          %v977 = vld [vmem:[#allocation2 + $0xf8] sm:$0xff]
          %v978 = vld [vmem:[#allocation2 + $0x100] sm:$0xff]
          %v979 = vld [vmem:[#allocation2 + $0x108] sm:$0xff]
          %v980 = vld [vmem:[#allocation2 + $0x110] sm:$0xff]
          %v981 = vld [vmem:[#allocation2 + $0x118] sm:$0xff]
          %v982 = vld [vmem:[#allocation2 + $0x120] sm:$0xff]
          %v983 = vld [vmem:[#allocation2 + $0x128] sm:$0xff]
          %v984 = vld [vmem:[#allocation2 + $0x130] sm:$0xff]
          %v985 = vld [vmem:[#allocation2 + $0x138] sm:$0xff]
          %v986 = vld [vmem:[#allocation2 + $0x140] sm:$0xff]
          %v987 = vld [vmem:[#allocation2 + $0x148] sm:$0xff]
          %v988 = vld [vmem:[#allocation2 + $0x150] sm:$0xff]
          %v989 = vld [vmem:[#allocation2 + $0x158] sm:$0xff]
          %v990 = vld [vmem:[#allocation2 + $0x160] sm:$0xff]
          %v991 = vld [vmem:[#allocation2 + $0x168] sm:$0xff]
          %v992 = vld [vmem:[#allocation2 + $0x170] sm:$0xff]
          %v993 = vld [vmem:[#allocation2 + $0x178] sm:$0xff]
          %v994 = vld [vmem:[#allocation2 + $0x180] sm:$0xff]
          %v995 = vld [vmem:[#allocation2 + $0x188] sm:$0xff]
          %v996 = vld [vmem:[#allocation2 + $0x190] sm:$0xff]
          %v997 = vld [vmem:[#allocation2 + $0x198] sm:$0xff]
          %v998 = vld [vmem:[#allocation2 + $0x1a0] sm:$0xff]
          %v999 = vld [vmem:[#allocation2 + $0x1a8] sm:$0xff]
          %v1000 = vld [vmem:[#allocation2 + $0x1b0] sm:$0xff]
          %v1001 = vld [vmem:[#allocation2 + $0x1b8] sm:$0xff]
          %v1002 = vld [vmem:[#allocation2 + $0x1c0] sm:$0xff]
          %v1003 = vld [vmem:[#allocation2 + $0x1c8] sm:$0xff]
          %v1004 = vld [vmem:[#allocation2 + $0x1d0] sm:$0xff]
          %v1005 = vld [vmem:[#allocation2 + $0x1d8] sm:$0xff]
          %v1006 = vld [vmem:[#allocation2 + $0x1e0] sm:$0xff]
          %v1007 = vld [vmem:[#allocation2 + $0x1e8] sm:$0xff]
          %v1008 = vld [vmem:[#allocation2 + $0x1f0] sm:$0xff]
          %v1009 = vld [vmem:[#allocation2 + $0x1f8] sm:$0xff]
          %v1010 = vld [vmem:[%s261] sm:$0x3]
          %v1012 = vlaneseq
          %v1013 = vshrl.u32 %v1012, 7
          %v1014 = vsub.s32 0, %v1013
          %v1015 = vrot.slane %v1010, %v1014
          %v1016 = vlaneseq
          %v1017 = vshrl.u32 %v1016, 7
          %v1018 = vsub.s32 1, %v1017
          %v1019 = vrot.slane %v1010, %v1018
          %v1022 = vadd.f32 %v946, %v1015
          %v1023 = vadd.f32 %v947, %v1019
          %v1024 = vadd.f32 %v948, %v1015
          %v1025 = vadd.f32 %v949, %v1019
          %v1026 = vadd.f32 %v950, %v1015
          %v1027 = vadd.f32 %v951, %v1019
          %v1028 = vadd.f32 %v952, %v1015
          %v1029 = vadd.f32 %v953, %v1019
          %v1030 = vadd.f32 %v954, %v1015
          %v1031 = vadd.f32 %v955, %v1019
          %v1032 = vadd.f32 %v956, %v1015
          %v1033 = vadd.f32 %v957, %v1019
          %v1034 = vadd.f32 %v958, %v1015
          %v1035 = vadd.f32 %v959, %v1019
          %v1036 = vadd.f32 %v960, %v1015
          %v1037 = vadd.f32 %v961, %v1019
          %v1038 = vadd.f32 %v962, %v1015
          %v1039 = vadd.f32 %v963, %v1019
          %v1040 = vadd.f32 %v964, %v1015
          %v1041 = vadd.f32 %v965, %v1019
          %v1042 = vadd.f32 %v966, %v1015
          %v1043 = vadd.f32 %v967, %v1019
          %v1044 = vadd.f32 %v968, %v1015
          %v1045 = vadd.f32 %v969, %v1019
          %v1046 = vadd.f32 %v970, %v1015
          %v1047 = vadd.f32 %v971, %v1019
          %v1048 = vadd.f32 %v972, %v1015
          %v1049 = vadd.f32 %v973, %v1019
          %v1050 = vadd.f32 %v974, %v1015
          %v1051 = vadd.f32 %v975, %v1019
          %v1052 = vadd.f32 %v976, %v1015
          %v1053 = vadd.f32 %v977, %v1019
          %v1054 = vadd.f32 %v978, %v1015
          %v1055 = vadd.f32 %v979, %v1019
          %v1056 = vadd.f32 %v980, %v1015
          %v1057 = vadd.f32 %v981, %v1019
          %v1058 = vadd.f32 %v982, %v1015
          %v1059 = vadd.f32 %v983, %v1019
          %v1060 = vadd.f32 %v984, %v1015
          %v1061 = vadd.f32 %v985, %v1019
          %v1062 = vadd.f32 %v986, %v1015
          %v1063 = vadd.f32 %v987, %v1019
          %v1064 = vadd.f32 %v988, %v1015
          %v1065 = vadd.f32 %v989, %v1019
          %v1066 = vadd.f32 %v990, %v1015
          %v1067 = vadd.f32 %v991, %v1019
          %v1068 = vadd.f32 %v992, %v1015
          %v1069 = vadd.f32 %v993, %v1019
          %v1070 = vadd.f32 %v994, %v1015
          %v1071 = vadd.f32 %v995, %v1019
          %v1072 = vadd.f32 %v996, %v1015
          %v1073 = vadd.f32 %v997, %v1019
          %v1074 = vadd.f32 %v998, %v1015
          %v1075 = vadd.f32 %v999, %v1019
          %v1076 = vadd.f32 %v1000, %v1015
          %v1077 = vadd.f32 %v1001, %v1019
          %v1078 = vadd.f32 %v1002, %v1015
          %v1079 = vadd.f32 %v1003, %v1019
          %v1080 = vadd.f32 %v1004, %v1015
          %v1081 = vadd.f32 %v1005, %v1019
          %v1082 = vadd.f32 %v1006, %v1015
          %v1083 = vadd.f32 %v1007, %v1019
          %v1084 = vadd.f32 %v1008, %v1015
          %v1085 = vadd.f32 %v1009, %v1019
          %v1086 = vmax.f32 %v1022, 0.0
          %v1087 = vmax.f32 %v1023, 0.0
          %v1088 = vmax.f32 %v1024, 0.0
          %v1089 = vmax.f32 %v1025, 0.0
          %v1090 = vmax.f32 %v1026, 0.0
          %v1091 = vmax.f32 %v1027, 0.0
          %v1092 = vmax.f32 %v1028, 0.0
          %v1093 = vmax.f32 %v1029, 0.0
          %v1094 = vmax.f32 %v1030, 0.0
          %v1095 = vmax.f32 %v1031, 0.0
          %v1096 = vmax.f32 %v1032, 0.0
          %v1097 = vmax.f32 %v1033, 0.0
          %v1098 = vmax.f32 %v1034, 0.0
          %v1099 = vmax.f32 %v1035, 0.0
          %v1100 = vmax.f32 %v1036, 0.0
          %v1101 = vmax.f32 %v1037, 0.0
          %v1102 = vmax.f32 %v1038, 0.0
          %v1103 = vmax.f32 %v1039, 0.0
          %v1104 = vmax.f32 %v1040, 0.0
          %v1105 = vmax.f32 %v1041, 0.0
          %v1106 = vmax.f32 %v1042, 0.0
          %v1107 = vmax.f32 %v1043, 0.0
          %v1108 = vmax.f32 %v1044, 0.0
          %v1109 = vmax.f32 %v1045, 0.0
          %v1110 = vmax.f32 %v1046, 0.0
          %v1111 = vmax.f32 %v1047, 0.0
          %v1112 = vmax.f32 %v1048, 0.0
          %v1113 = vmax.f32 %v1049, 0.0
          %v1114 = vmax.f32 %v1050, 0.0
          %v1115 = vmax.f32 %v1051, 0.0
          %v1116 = vmax.f32 %v1052, 0.0
          %v1117 = vmax.f32 %v1053, 0.0
          %v1118 = vmax.f32 %v1054, 0.0
          %v1119 = vmax.f32 %v1055, 0.0
          %v1120 = vmax.f32 %v1056, 0.0
          %v1121 = vmax.f32 %v1057, 0.0
          %v1122 = vmax.f32 %v1058, 0.0
          %v1123 = vmax.f32 %v1059, 0.0
          %v1124 = vmax.f32 %v1060, 0.0
          %v1125 = vmax.f32 %v1061, 0.0
          %v1126 = vmax.f32 %v1062, 0.0
          %v1127 = vmax.f32 %v1063, 0.0
          %v1128 = vmax.f32 %v1064, 0.0
          %v1129 = vmax.f32 %v1065, 0.0
          %v1130 = vmax.f32 %v1066, 0.0
          %v1131 = vmax.f32 %v1067, 0.0
          %v1132 = vmax.f32 %v1068, 0.0
          %v1133 = vmax.f32 %v1069, 0.0
          %v1134 = vmax.f32 %v1070, 0.0
          %v1135 = vmax.f32 %v1071, 0.0
          %v1136 = vmax.f32 %v1072, 0.0
          %v1137 = vmax.f32 %v1073, 0.0
          %v1138 = vmax.f32 %v1074, 0.0
          %v1139 = vmax.f32 %v1075, 0.0
          %v1140 = vmax.f32 %v1076, 0.0
          %v1141 = vmax.f32 %v1077, 0.0
          %v1142 = vmax.f32 %v1078, 0.0
          %v1143 = vmax.f32 %v1079, 0.0
          %v1144 = vmax.f32 %v1080, 0.0
          %v1145 = vmax.f32 %v1081, 0.0
          %v1146 = vmax.f32 %v1082, 0.0
          %v1147 = vmax.f32 %v1083, 0.0
          %v1148 = vmax.f32 %v1084, 0.0
          %v1149 = vmax.f32 %v1085, 0.0
          %v1150 = vpack.c.bf16 %v1088, %v1086
          %v1151 = vpack.c.bf16 %v1089, %v1087
          %v1152 = vpack.c.bf16 %v1092, %v1090
          %v1153 = vpack.c.bf16 %v1093, %v1091
          %v1154 = vpack.c.bf16 %v1096, %v1094
          %v1155 = vpack.c.bf16 %v1097, %v1095
          %v1156 = vpack.c.bf16 %v1100, %v1098
          %v1157 = vpack.c.bf16 %v1101, %v1099
          %v1158 = vpack.c.bf16 %v1104, %v1102
          %v1159 = vpack.c.bf16 %v1105, %v1103
          %v1160 = vpack.c.bf16 %v1108, %v1106
          %v1161 = vpack.c.bf16 %v1109, %v1107
          %v1162 = vpack.c.bf16 %v1112, %v1110
          %v1163 = vpack.c.bf16 %v1113, %v1111
          %v1164 = vpack.c.bf16 %v1116, %v1114
          %v1165 = vpack.c.bf16 %v1117, %v1115
          %v1166 = vpack.c.bf16 %v1120, %v1118
          %v1167 = vpack.c.bf16 %v1121, %v1119
          %v1168 = vpack.c.bf16 %v1124, %v1122
          %v1169 = vpack.c.bf16 %v1125, %v1123
          %v1170 = vpack.c.bf16 %v1128, %v1126
          %v1171 = vpack.c.bf16 %v1129, %v1127
          %v1172 = vpack.c.bf16 %v1132, %v1130
          %v1173 = vpack.c.bf16 %v1133, %v1131
          %v1174 = vpack.c.bf16 %v1136, %v1134
          %v1175 = vpack.c.bf16 %v1137, %v1135
          %v1176 = vpack.c.bf16 %v1140, %v1138
          %v1177 = vpack.c.bf16 %v1141, %v1139
          %v1178 = vpack.c.bf16 %v1144, %v1142
          %v1179 = vpack.c.bf16 %v1145, %v1143
          %v1180 = vpack.c.bf16 %v1148, %v1146
          %v1181 = vpack.c.bf16 %v1149, %v1147
          %v1214 = vunpack.c.l.b16 %v1150
          %v1215 = vunpack.c.l.b16 %v1151
          %v1216 = vunpack.c.h.b16 %v1150
          %v1217 = vunpack.c.h.b16 %v1151
          %v1218 = vunpack.c.l.b16 %v1152
          %v1219 = vunpack.c.l.b16 %v1153
          %v1220 = vunpack.c.h.b16 %v1152
          %v1221 = vunpack.c.h.b16 %v1153
          %v1222 = vunpack.c.l.b16 %v1154
          %v1223 = vunpack.c.l.b16 %v1155
          %v1224 = vunpack.c.h.b16 %v1154
          %v1225 = vunpack.c.h.b16 %v1155
          %v1226 = vunpack.c.l.b16 %v1156
          %v1227 = vunpack.c.l.b16 %v1157
          %v1228 = vunpack.c.h.b16 %v1156
          %v1229 = vunpack.c.h.b16 %v1157
          %v1230 = vunpack.c.l.b16 %v1158
          %v1231 = vunpack.c.l.b16 %v1159
          %v1232 = vunpack.c.h.b16 %v1158
          %v1233 = vunpack.c.h.b16 %v1159
          %v1234 = vunpack.c.l.b16 %v1160
          %v1235 = vunpack.c.l.b16 %v1161
          %v1236 = vunpack.c.h.b16 %v1160
          %v1237 = vunpack.c.h.b16 %v1161
          %v1238 = vunpack.c.l.b16 %v1162
          %v1239 = vunpack.c.l.b16 %v1163
          %v1240 = vunpack.c.h.b16 %v1162
          %v1241 = vunpack.c.h.b16 %v1163
          %v1242 = vunpack.c.l.b16 %v1164
          %v1243 = vunpack.c.l.b16 %v1165
          %v1244 = vunpack.c.h.b16 %v1164
          %v1245 = vunpack.c.h.b16 %v1165
          %v1246 = vunpack.c.l.b16 %v1166
          %v1247 = vunpack.c.l.b16 %v1167
          %v1248 = vunpack.c.h.b16 %v1166
          %v1249 = vunpack.c.h.b16 %v1167
          %v1250 = vunpack.c.l.b16 %v1168
          %v1251 = vunpack.c.l.b16 %v1169
          %v1252 = vunpack.c.h.b16 %v1168
          %v1253 = vunpack.c.h.b16 %v1169
          %v1254 = vunpack.c.l.b16 %v1170
          %v1255 = vunpack.c.l.b16 %v1171
          %v1256 = vunpack.c.h.b16 %v1170
          %v1257 = vunpack.c.h.b16 %v1171
          %v1258 = vunpack.c.l.b16 %v1172
          %v1259 = vunpack.c.l.b16 %v1173
          %v1260 = vunpack.c.h.b16 %v1172
          %v1261 = vunpack.c.h.b16 %v1173
          %v1262 = vunpack.c.l.b16 %v1174
          %v1263 = vunpack.c.l.b16 %v1175
          %v1264 = vunpack.c.h.b16 %v1174
          %v1265 = vunpack.c.h.b16 %v1175
          %v1266 = vunpack.c.l.b16 %v1176
          %v1267 = vunpack.c.l.b16 %v1177
          %v1268 = vunpack.c.h.b16 %v1176
          %v1269 = vunpack.c.h.b16 %v1177
          %v1270 = vunpack.c.l.b16 %v1178
          %v1271 = vunpack.c.l.b16 %v1179
          %v1272 = vunpack.c.h.b16 %v1178
          %v1273 = vunpack.c.h.b16 %v1179
          %v1274 = vunpack.c.l.b16 %v1180
          %v1275 = vunpack.c.l.b16 %v1181
          %v1276 = vunpack.c.h.b16 %v1180
          %v1277 = vunpack.c.h.b16 %v1181
          %v1278 = vpack.c.b16 %v1215, %v1214
          %v1279 = vpack.c.b16 %v1217, %v1216
          %v1280 = vpack.c.b16 %v1219, %v1218
          %v1281 = vpack.c.b16 %v1221, %v1220
          %v1282 = vpack.c.b16 %v1223, %v1222
          %v1283 = vpack.c.b16 %v1225, %v1224
          %v1284 = vpack.c.b16 %v1227, %v1226
          %v1285 = vpack.c.b16 %v1229, %v1228
          %v1286 = vpack.c.b16 %v1231, %v1230
          %v1287 = vpack.c.b16 %v1233, %v1232
          %v1288 = vpack.c.b16 %v1235, %v1234
          %v1289 = vpack.c.b16 %v1237, %v1236
          %v1290 = vpack.c.b16 %v1239, %v1238
          %v1291 = vpack.c.b16 %v1241, %v1240
          %v1292 = vpack.c.b16 %v1243, %v1242
          %v1293 = vpack.c.b16 %v1245, %v1244
          %v1294 = vpack.c.b16 %v1247, %v1246
          %v1295 = vpack.c.b16 %v1249, %v1248
          %v1296 = vpack.c.b16 %v1251, %v1250
          %v1297 = vpack.c.b16 %v1253, %v1252
          %v1298 = vpack.c.b16 %v1255, %v1254
          %v1299 = vpack.c.b16 %v1257, %v1256
          %v1300 = vpack.c.b16 %v1259, %v1258
          %v1301 = vpack.c.b16 %v1261, %v1260
          %v1302 = vpack.c.b16 %v1263, %v1262
          %v1303 = vpack.c.b16 %v1265, %v1264
          %v1304 = vpack.c.b16 %v1267, %v1266
          %v1305 = vpack.c.b16 %v1269, %v1268
          %v1306 = vpack.c.b16 %v1271, %v1270
          %v1307 = vpack.c.b16 %v1273, %v1272
          %v1308 = vpack.c.b16 %v1275, %v1274
          %v1309 = vpack.c.b16 %v1277, %v1276
          %1342 = vst [vmem:[%s254] sm:$0xff] %v1278
          %1343 = vst [vmem:[%s254 + $0x8] sm:$0xff] %v1279
          %1344 = vst [vmem:[%s254 + $0x10] sm:$0xff] %v1280
          %1345 = vst [vmem:[%s254 + $0x18] sm:$0xff] %v1281
          %1346 = vst [vmem:[%s254 + $0x20] sm:$0xff] %v1282
          %1347 = vst [vmem:[%s254 + $0x28] sm:$0xff] %v1283
          %1348 = vst [vmem:[%s254 + $0x30] sm:$0xff] %v1284
          %1349 = vst [vmem:[%s254 + $0x38] sm:$0xff] %v1285
          %1350 = vst [vmem:[%s254 + $0x40] sm:$0xff] %v1286
          %1351 = vst [vmem:[%s254 + $0x48] sm:$0xff] %v1287
          %1352 = vst [vmem:[%s254 + $0x50] sm:$0xff] %v1288
          %1353 = vst [vmem:[%s254 + $0x58] sm:$0xff] %v1289
          %1354 = vst [vmem:[%s254 + $0x60] sm:$0xff] %v1290
          %1355 = vst [vmem:[%s254 + $0x68] sm:$0xff] %v1291
          %1356 = vst [vmem:[%s254 + $0x70] sm:$0xff] %v1292
          %1357 = vst [vmem:[%s254 + $0x78] sm:$0xff] %v1293
          %1358 = vst [vmem:[%s254 + $0x80] sm:$0xff] %v1294
          %1359 = vst [vmem:[%s254 + $0x88] sm:$0xff] %v1295
          %1360 = vst [vmem:[%s254 + $0x90] sm:$0xff] %v1296
          %1361 = vst [vmem:[%s254 + $0x98] sm:$0xff] %v1297
          %1362 = vst [vmem:[%s254 + $0xa0] sm:$0xff] %v1298
          %1363 = vst [vmem:[%s254 + $0xa8] sm:$0xff] %v1299
          %1364 = vst [vmem:[%s254 + $0xb0] sm:$0xff] %v1300
          %1365 = vst [vmem:[%s254 + $0xb8] sm:$0xff] %v1301
          %1366 = vst [vmem:[%s254 + $0xc0] sm:$0xff] %v1302
          %1367 = vst [vmem:[%s254 + $0xc8] sm:$0xff] %v1303
          %1368 = vst [vmem:[%s254 + $0xd0] sm:$0xff] %v1304
          %1369 = vst [vmem:[%s254 + $0xd8] sm:$0xff] %v1305
          %1370 = vst [vmem:[%s254 + $0xe0] sm:$0xff] %v1306
          %1371 = vst [vmem:[%s254 + $0xe8] sm:$0xff] %v1307
          %1372 = vst [vmem:[%s254 + $0xf0] sm:$0xff] %v1308
          %1373 = vst [vmem:[%s254 + $0xf8] sm:$0xff] %v1309
        $region48: #{tpu_custom_call.1} parent=31 // pred_fallthru
          _
        %s1374 = sand.u32 %s132, 1
        %s1375 = scalar_lea.sflag [#allocation5], %s1374
        %s1376 = sand.u32 %s132, 1
        %s1377 = smul.addr %s1376, 256
        %s1378 = scalar_lea.vmem [#allocation8], %s1377
        // Predicated region
        $region49: #{tpu_custom_call.1} parent=31 // pred_check
          %p1379 = pneg %p142
        $region50: #{tpu_custom_call.1} parent=31 // pred_check_branch
          %1381 = sbr.rel (%p1379) target = $region52
        $region51: #{tpu_custom_call.1} parent=31 // pred_region
          %s1382 = smul.u32 32, %s26
          %s1383 = smul.u32 2, %s27
          %s1385 = ssub.s32 4096, 4096
          %1386 = vsyncadd %s1375, %s1385
          %s1387 = smul.addr %s1382, 2
          %s1388 = sadd.s32 %s1383, %s1387
          %s1389 = smul.addr %s1388, 64
          %s1390 = scalar_lea.hbm %s3, %s1389
          %s1391 = sshll.u32 %s1378, 4
          %s1392 = int_to_ptr.vmem [resolvable:$true] %s1391
          %1397 = dma.vmem_to_hbm [thread:$0]  %s1392, 4096, %s1390, %s1375, 128, 128, 8
        $region52: #{tpu_custom_call.1} parent=31 // pred_fallthru
          _
      $region32: #{tpu_custom_call.1} parent=5 // pred_fallthru
        _
      %p1398 = scmp.le.s32.totalorder 2, %s16
      // Predicated region
      $region53: #{tpu_custom_call.1} parent=5 // pred_check
        %p1399 = pneg %p1398
      $region54: #{tpu_custom_call.1} parent=5 // pred_check_branch
        %1401 = sbr.rel (%p1399) target = $region56
      $region55: #{tpu_custom_call.1} parent=5 // pred_region
        %s1402 = ssub.s32 %s16, 2
        // Predicated region
        $region57: #{tpu_custom_call.1} parent=55 // pred_check
          %p1403 = pneg %p148
        $region58: #{tpu_custom_call.1} parent=55 // pred_check_branch
          %1405 = sbr.rel (%p1403) target = $region60
        $region59: #{tpu_custom_call.1} parent=55 // pred_region
          %s1406 = sand.u32 %s133, 1
          %s1407 = scalar_lea.sflag [#allocation5], %s1406
          %s1408 = sand.u32 %s133, 1
          %s1409 = smul.addr %s1408, 256
          %s1410 = scalar_lea.vmem [#allocation8], %s1409
          %1411 = dma.done %s1407, 4096
        $region60: #{tpu_custom_call.1} parent=55 // pred_fallthru
          _
      $region56: #{tpu_custom_call.1} parent=5 // pred_fallthru
        _
    $region6: #{tpu_custom_call.1} parent=1 // loop_footer
      %s20 = sadd.s32 1, %s16
    $region7: #{tpu_custom_call.1} parent=1 // loop_footer_branch
      %15 = sbr.rel target = $region3
    $region8: #{tpu_custom_call.1} parent=1 // loop_exit
      _
    %1412 = vsyncpa [#allocation4], 1
    %s1413 = scalar_lea.sflag [#allocation4], 1
    %1414 = vsyncpa %s1413, 1
    %1415 = vsyncpa [#allocation7], 1
    %1416 = vsyncpa [#allocation5], 1
    %s1417 = scalar_lea.sflag [#allocation5], 1
    %1418 = vsyncpa %s1417, 1

</llo_original>
